<compile_context>
chip_gen: v7x
topology: tpu7x:2x2x1
jax: 0.10.0
libtpu: 0.0.40
codegen_flags: <defaults>
</compile_context>

<pallas_src>
import jax
import jax.numpy as jnp
from jax.experimental import pallas as pl
from jax.experimental.pallas import tpu as pltpu


# ----------------------------- kernel helpers -----------------------------

def _is_pow2(n: int) -> bool:
    return n > 0 and (n & (n - 1)) == 0


def _hoist(nt):
    """Hoist per-aggregator constants: (nt, 1-nt, 1/nt, 1/(1-nt)) once per stage."""
    one_minus = 1.0 - nt
    return (nt, one_minus, 1.0 / nt, 1.0 / one_minus)


def _min_uninorm(a, b, prm):
    """Pairwise 'min' uninorm (Lukasiewicz t-norm/t-conorm, 'min' off-diagonal).

    Reproduces the PyTorch assignment order: mask_11 overwrites the mask_00
    overlap at a == b == nt, mask_xx is disjoint from both, and the three masks
    cover every element.
    """
    nt, one_minus_nt, inv_nt, inv_1mnt = prm
    s = a + b
    # t-norm region:    nt * max(0, a/nt + b/nt - 1)
    val00 = nt * jnp.maximum(0.0, (s - nt) * inv_nt)
    # t-conorm region:  nt + (1-nt) * min(1, (a-nt)/(1-nt) + (b-nt)/(1-nt))
    val11 = nt + one_minus_nt * jnp.minimum(1.0, (s - 2.0 * nt) * inv_1mnt)
    a_lt = a < nt
    a_gt = a > nt
    b_lt = b < nt
    b_gt = b > nt
    mask11 = jnp.logical_and(jnp.logical_not(a_lt), jnp.logical_not(b_lt))
    maskxx = jnp.logical_or(jnp.logical_and(a_gt, b_lt),
                            jnp.logical_and(a_lt, b_gt))
    return jnp.where(maskxx, jnp.minimum(a, b),
                     jnp.where(mask11, val11, val00))


def _sublane_butterfly(x, prm):
    """Reduce all rows of x (power-of-two, multiple-of-8 row count) into row 0.

    Step k combines each row with the row `stride` below it (stride = 1,2,4,...)
    via a circular sublane roll.  The dependency cone of row 0 never wraps, so
    row 0 holds exactly the half-split tree of UninormAggregator.uninorm.
    """
    n = x.shape[0]
    y = x
    stride = 1
    while stride < n:
        shifted = pltpu.roll(y, shift=n - stride, axis=0)   # shifted[i] = y[(i+stride) % n]
        y = _min_uninorm(y, shifted, prm)
        stride *= 2
    return y[0:1, :]


def _sublane_slice_tree(x, prm, lo, hi):
    """Exact half-split tree over rows lo..hi-1 (any count); full lane width combines."""
    n = hi - lo
    if n == 1:
        return x[lo:lo + 1, :]
    half = n // 2
    return _min_uninorm(_sublane_slice_tree(x, prm, lo, lo + half),
                        _sublane_slice_tree(x, prm, lo + half, hi), prm)


def _lane_block_tree(xg, prm, lo, hi, bc):
    """Exact half-split tree over the M lane-blocks of width bc (any M).

    Leaves are contiguous, tile-aligned (2, bc) lane slices, so each combine
    runs at full lane utilisation and independent same-level nodes are visible
    to the scheduler.  Returns a (2, bc) array (one column per sample).
    """
    n = hi - lo
    if n == 1:
        return xg[:, lo * bc:(lo + 1) * bc]
    half = n // 2
    return _min_uninorm(_lane_block_tree(xg, prm, lo, lo + half, bc),
                        _lane_block_tree(xg, prm, lo + half, hi, bc), prm)


def _make_kernel(m: int, bc: int):
    """Kernel for one grid step: bc samples, m global elements, column = e*bc + sample."""

    def kernel(x_neg_ref, x_loc_ref, ntl_ref, ntg_ref, o_ref):
        x_loc = x_loc_ref[...]                    # (R-1, m*bc)
        ntl = ntl_ref[...]                        # (1,   m*bc)
        r_loc = x_loc.shape[0]

        # Local aggregator: reduce R-1 rows independently per lane.
        prm_l = _hoist(ntl)
        if _is_pow2(r_loc) and r_loc % 8 == 0:
            x_pos = _sublane_butterfly(x_loc, prm_l)              # (1, m*bc)
        else:
            x_pos = _sublane_slice_tree(x_loc, prm_l, 0, r_loc)   # (1, m*bc)

        # Global aggregator: stack (x_neg, x_pos) on sublanes, reduce the m
        # tile-aligned lane-blocks per sample.
        xg = jnp.concatenate([x_neg_ref[...], x_pos], axis=0)     # (2, m*bc)
        prm_g = _hoist(ntg_ref[...])                              # (2, 1)
        o_ref[...] = _lane_block_tree(xg, prm_g, 0, m, bc)        # (2, bc)

    return kernel


# ----------------------------- wrappers -----------------------------

def covid_no_covid_forward_batched(x, neutral_local, neutral_global, *, block_batch=None):
    """Batched CovidNoCovidNet forward.

    x: (B, R, M); per sample, row 0 is x_neg and rows 1..R-1 feed the local
    aggregator (PyTorch x[1:, :].t()).  neutral_local: (M,), neutral_global: (2,).
    Returns (B, 2).
    """
    b, r, m = x.shape
    assert r >= 2, "need at least one local row below x_neg"
    if block_batch is None:
        block_batch = 128 if b % 128 == 0 else b
    assert b % block_batch == 0
    bc = block_batch
    g = b // bc
    lanes = m * bc

    x = x.astype(jnp.float32)
    # Lane layout inside each grid step: column = element*bc + sample (lane-dense batch).
    x_loc = (x[:, 1:, :].reshape(g, bc, r - 1, m)
             .transpose(2, 0, 3, 1).reshape(r - 1, g * lanes))
    x_neg = (x[:, 0, :].reshape(g, bc, m)
             .transpose(0, 2, 1).reshape(1, g * lanes))
    ntl = jnp.repeat(neutral_local.astype(jnp.float32).reshape(m), bc).reshape(1, lanes)
    ntg = neutral_global.astype(jnp.float32).reshape(2, 1)

    out = pl.pallas_call(
        _make_kernel(m, bc),
        out_shape=jax.ShapeDtypeStruct((2, b), jnp.float32),
        grid=(g,),
        in_specs=[
            pl.BlockSpec((1, lanes), lambda i: (0, i)),       # x_neg
            pl.BlockSpec((r - 1, lanes), lambda i: (0, i)),   # local rows
            pl.BlockSpec((1, lanes), lambda i: (0, 0)),       # neutral_local (tiled per chunk)
            pl.BlockSpec((2, 1), lambda i: (0, 0)),           # neutral_global
        ],
        out_specs=pl.BlockSpec((2, bc), lambda i: (0, i)),
        compiler_params=pltpu.CompilerParams(
            dimension_semantics=("parallel",)),               # shard batch chunks across TCs (v7x)
    )(x_neg, x_loc, ntl, ntg)
    return out.T                                              # (B, 2)


def covid_no_covid_forward(x, neutral_local, neutral_global):
    """Module-faithful single-sample forward: x (R, M) -> (2,)."""
    return covid_no_covid_forward_batched(x[None], neutral_local, neutral_global)[0]


# --------------------- pure-JAX reference (faithful to PyTorch) ---------------------

def _ref_min_uninorm(x, nt):  # x: (B, 2), nt: (B,)
    a, b = x[:, 0], x[:, 1]
    mask00 = (a <= nt) & (b <= nt)
    mask11 = (a >= nt) & (b >= nt)
    maskxx = ((a > nt) & (b < nt)) | ((a < nt) & (b > nt))
    val00 = nt * jnp.maximum(0.0, a / nt + b / nt - 1.0)
    val11 = nt + (1.0 - nt) * jnp.minimum(
        1.0, (a - nt) / (1.0 - nt) + (b - nt) / (1.0 - nt))
    valxx = jnp.minimum(a, b)
    y = jnp.zeros_like(a)
    y = jnp.where(mask00, val00, y)
    y = jnp.where(mask11, val11, y)   # overwrites the mask00 overlap, like PyTorch
    y = jnp.where(maskxx, valxx, y)
    return y


def _ref_uninorm(x, nt):  # x: (B, F), nt: (B,)
    n = x.shape[1]
    if n == 1:
        return x[:, 0]
    if n == 2:
        return _ref_min_uninorm(x, nt)
    half = n // 2
    return _ref_min_uninorm(
        jnp.stack([_ref_uninorm(x[:, :half], nt),
                   _ref_uninorm(x[:, half:], nt)], axis=1), nt)


def ref_forward(x, neutral_local, neutral_global):
    x_neg = x[0, :]
    x_pos = _ref_uninorm(x[1:, :].T, neutral_local)
    return _ref_uninorm(jnp.stack((x_neg, x_pos), axis=0), neutral_global)


# ----------------------------------- main -----------------------------------

if __name__ == "__main__":
    key = jax.random.PRNGKey(0)
    k1, k2, k3 = jax.random.split(key, 3)

    # Batched run: B samples, each (R, M) with R-1 = 8 local rows, M = 8 columns
    # (so num_params = M + 1 = 9).  Bc = 128 -> grid of 2 parallel chunks,
    # per-step lane width = M*Bc = 1024.
    B, R, M = 256, 9, 8
    xb = jax.random.uniform(k1, (B, R, M), dtype=jnp.float32)
    # Learned neutral parameters strictly inside (0, 1) (as after training /
    # clamp_params), exercising per-element neutral indexing in both aggregators.
    neutral_local = (0.25 + 0.5 * jax.random.uniform(k2, (M,))).astype(jnp.float32)
    neutral_global = jnp.array([0.35, 0.55], dtype=jnp.float32)

    out_b = jax.jit(covid_no_covid_forward_batched)(xb, neutral_local, neutral_global)
    out_b = jax.block_until_ready(out_b)
    ref_b = jax.jit(jax.vmap(ref_forward, in_axes=(0, None, None)))(
        xb, neutral_local, neutral_global)
    assert out_b.shape == (B, 2), out_b.shape
    assert jnp.allclose(out_b, ref_b, atol=1e-5), (out_b[:4], ref_b[:4])

    # Single-sample, module-faithful interface with a non-power-of-two local
    # length (R-1 = 6) to exercise the exact slice-tree fallback.
    x1 = jax.random.uniform(k3, (7, M), dtype=jnp.float32)
    out_1 = jax.jit(covid_no_covid_forward)(x1, neutral_local, neutral_global)
    out_1 = jax.block_until_ready(out_1)
    ref_1 = ref_forward(x1, neutral_local, neutral_global)
    assert out_1.shape == (2,), out_1.shape
    assert jnp.allclose(out_1, ref_1, atol=1e-5), (out_1, ref_1)

    print("KERNEL_OK")
</pallas_src>

<mosaic_0001>
module attributes {stable_mosaic.version = 11 : i64} {
  func.func @kernel(%arg0: i32, %arg1: memref<1x1024xf32, #tpu.memory_space<vmem>>, %arg2: memref<8x1024xf32, #tpu.memory_space<vmem>>, %arg3: memref<1x1024xf32, #tpu.memory_space<vmem>>, %arg4: memref<2x1xf32, #tpu.memory_space<vmem>>, %arg5: memref<2x128xf32, #tpu.memory_space<vmem>>) attributes {dimension_semantics = [#tpu.dimension_semantics<parallel>], iteration_bounds = array<i64: 2>, scalar_prefetch = 0 : i64, scratch_operands = 0 : i64, tpu.core_type = #tpu.core_type<tc>, window_params = [{transform_indices = @transform_0, window_bounds = array<i64: 1, 1024>}, {transform_indices = @transform_1, window_bounds = array<i64: 8, 1024>}, {pipeline_mode = #tpu.pipeline_mode<synchronous>, transform_indices = @transform_2, window_bounds = array<i64: 1, 1024>}, {pipeline_mode = #tpu.pipeline_mode<synchronous>, transform_indices = @transform_3, window_bounds = array<i64: 2, 1>}, {transform_indices = @transform_4, window_bounds = array<i64: 2, 128>}]} {
    %c0 = arith.constant 0 : index
    %c0_0 = arith.constant 0 : index
    %0 = vector.load %arg2[%c0, %c0_0] : memref<8x1024xf32, #tpu.memory_space<vmem>>, vector<8x1024xf32>
    %c0_1 = arith.constant 0 : index
    %c0_2 = arith.constant 0 : index
    %1 = vector.load %arg3[%c0_1, %c0_2] : memref<1x1024xf32, #tpu.memory_space<vmem>>, vector<1x1024xf32>
    %cst = arith.constant 1.000000e+00 : f32
    %2 = vector.broadcast %cst : f32 to vector<1x1024xf32>
    %3 = arith.subf %2, %1 : vector<1x1024xf32>
    %cst_3 = arith.constant 1.000000e+00 : f32
    %4 = vector.broadcast %cst_3 : f32 to vector<1x1024xf32>
    %5 = arith.divf %4, %1 : vector<1x1024xf32>
    %cst_4 = arith.constant 1.000000e+00 : f32
    %6 = vector.broadcast %cst_4 : f32 to vector<1x1024xf32>
    %7 = arith.divf %6, %3 : vector<1x1024xf32>
    %c7_i32 = arith.constant 7 : i32
    %8 = tpu.dynamic_rotate %0 by %c7_i32 dim 0 : vector<8x1024xf32>, i32 -> vector<8x1024xf32>
    %9 = arith.addf %0, %8 : vector<8x1024xf32>
    %10 = vector.broadcast %1 : vector<1x1024xf32> to vector<8x1024xf32>
    %11 = arith.subf %9, %10 : vector<8x1024xf32>
    %12 = vector.broadcast %5 : vector<1x1024xf32> to vector<8x1024xf32>
    %13 = arith.mulf %11, %12 : vector<8x1024xf32>
    %cst_5 = arith.constant 0.000000e+00 : f32
    %14 = vector.broadcast %cst_5 : f32 to vector<8x1024xf32>
    %15 = arith.maximumf %14, %13 : vector<8x1024xf32>
    %16 = vector.broadcast %1 : vector<1x1024xf32> to vector<8x1024xf32>
    %17 = arith.mulf %16, %15 : vector<8x1024xf32>
    %cst_6 = arith.constant 2.000000e+00 : f32
    %18 = vector.broadcast %cst_6 : f32 to vector<1x1024xf32>
    %19 = arith.mulf %18, %1 : vector<1x1024xf32>
    %20 = vector.broadcast %19 : vector<1x1024xf32> to vector<8x1024xf32>
    %21 = arith.subf %9, %20 : vector<8x1024xf32>
    %22 = vector.broadcast %7 : vector<1x1024xf32> to vector<8x1024xf32>
    %23 = arith.mulf %21, %22 : vector<8x1024xf32>
    %cst_7 = arith.constant 1.000000e+00 : f32
    %24 = vector.broadcast %cst_7 : f32 to vector<8x1024xf32>
    %25 = arith.minimumf %24, %23 : vector<8x1024xf32>
    %26 = vector.broadcast %3 : vector<1x1024xf32> to vector<8x1024xf32>
    %27 = arith.mulf %26, %25 : vector<8x1024xf32>
    %28 = vector.broadcast %1 : vector<1x1024xf32> to vector<8x1024xf32>
    %29 = arith.addf %28, %27 : vector<8x1024xf32>
    %30 = vector.broadcast %1 : vector<1x1024xf32> to vector<8x1024xf32>
    %31 = arith.cmpf olt, %0, %30 : vector<8x1024xf32>
    %32 = vector.broadcast %1 : vector<1x1024xf32> to vector<8x1024xf32>
    %33 = arith.cmpf ogt, %0, %32 : vector<8x1024xf32>
    %34 = vector.broadcast %1 : vector<1x1024xf32> to vector<8x1024xf32>
    %35 = arith.cmpf olt, %8, %34 : vector<8x1024xf32>
    %36 = vector.broadcast %1 : vector<1x1024xf32> to vector<8x1024xf32>
    %37 = arith.cmpf ogt, %8, %36 : vector<8x1024xf32>
    %cst_8 = arith.constant dense<true> : vector<8x1024xi1>
    %38 = arith.xori %31, %cst_8 : vector<8x1024xi1>
    %cst_9 = arith.constant dense<true> : vector<8x1024xi1>
    %39 = arith.xori %35, %cst_9 : vector<8x1024xi1>
    %40 = arith.andi %38, %39 : vector<8x1024xi1>
    %41 = arith.andi %33, %35 : vector<8x1024xi1>
    %42 = arith.andi %31, %37 : vector<8x1024xi1>
    %43 = arith.ori %41, %42 : vector<8x1024xi1>
    %44 = arith.minimumf %0, %8 : vector<8x1024xf32>
    %45 = arith.select %40, %29, %17 : vector<8x1024xi1>, vector<8x1024xf32>
    %46 = arith.select %43, %44, %45 : vector<8x1024xi1>, vector<8x1024xf32>
    %c6_i32 = arith.constant 6 : i32
    %47 = tpu.dynamic_rotate %46 by %c6_i32 dim 0 : vector<8x1024xf32>, i32 -> vector<8x1024xf32>
    %48 = arith.addf %46, %47 : vector<8x1024xf32>
    %49 = vector.broadcast %1 : vector<1x1024xf32> to vector<8x1024xf32>
    %50 = arith.subf %48, %49 : vector<8x1024xf32>
    %51 = vector.broadcast %5 : vector<1x1024xf32> to vector<8x1024xf32>
    %52 = arith.mulf %50, %51 : vector<8x1024xf32>
    %cst_10 = arith.constant 0.000000e+00 : f32
    %53 = vector.broadcast %cst_10 : f32 to vector<8x1024xf32>
    %54 = arith.maximumf %53, %52 : vector<8x1024xf32>
    %55 = vector.broadcast %1 : vector<1x1024xf32> to vector<8x1024xf32>
    %56 = arith.mulf %55, %54 : vector<8x1024xf32>
    %cst_11 = arith.constant 2.000000e+00 : f32
    %57 = vector.broadcast %cst_11 : f32 to vector<1x1024xf32>
    %58 = arith.mulf %57, %1 : vector<1x1024xf32>
    %59 = vector.broadcast %58 : vector<1x1024xf32> to vector<8x1024xf32>
    %60 = arith.subf %48, %59 : vector<8x1024xf32>
    %61 = vector.broadcast %7 : vector<1x1024xf32> to vector<8x1024xf32>
    %62 = arith.mulf %60, %61 : vector<8x1024xf32>
    %cst_12 = arith.constant 1.000000e+00 : f32
    %63 = vector.broadcast %cst_12 : f32 to vector<8x1024xf32>
    %64 = arith.minimumf %63, %62 : vector<8x1024xf32>
    %65 = vector.broadcast %3 : vector<1x1024xf32> to vector<8x1024xf32>
    %66 = arith.mulf %65, %64 : vector<8x1024xf32>
    %67 = vector.broadcast %1 : vector<1x1024xf32> to vector<8x1024xf32>
    %68 = arith.addf %67, %66 : vector<8x1024xf32>
    %69 = vector.broadcast %1 : vector<1x1024xf32> to vector<8x1024xf32>
    %70 = arith.cmpf olt, %46, %69 : vector<8x1024xf32>
    %71 = vector.broadcast %1 : vector<1x1024xf32> to vector<8x1024xf32>
    %72 = arith.cmpf ogt, %46, %71 : vector<8x1024xf32>
    %73 = vector.broadcast %1 : vector<1x1024xf32> to vector<8x1024xf32>
    %74 = arith.cmpf olt, %47, %73 : vector<8x1024xf32>
    %75 = vector.broadcast %1 : vector<1x1024xf32> to vector<8x1024xf32>
    %76 = arith.cmpf ogt, %47, %75 : vector<8x1024xf32>
    %cst_13 = arith.constant dense<true> : vector<8x1024xi1>
    %77 = arith.xori %70, %cst_13 : vector<8x1024xi1>
    %cst_14 = arith.constant dense<true> : vector<8x1024xi1>
    %78 = arith.xori %74, %cst_14 : vector<8x1024xi1>
    %79 = arith.andi %77, %78 : vector<8x1024xi1>
    %80 = arith.andi %72, %74 : vector<8x1024xi1>
    %81 = arith.andi %70, %76 : vector<8x1024xi1>
    %82 = arith.ori %80, %81 : vector<8x1024xi1>
    %83 = arith.minimumf %46, %47 : vector<8x1024xf32>
    %84 = arith.select %79, %68, %56 : vector<8x1024xi1>, vector<8x1024xf32>
    %85 = arith.select %82, %83, %84 : vector<8x1024xi1>, vector<8x1024xf32>
    %c4_i32 = arith.constant 4 : i32
    %86 = tpu.dynamic_rotate %85 by %c4_i32 dim 0 : vector<8x1024xf32>, i32 -> vector<8x1024xf32>
    %87 = arith.addf %85, %86 : vector<8x1024xf32>
    %88 = vector.broadcast %1 : vector<1x1024xf32> to vector<8x1024xf32>
    %89 = arith.subf %87, %88 : vector<8x1024xf32>
    %90 = vector.broadcast %5 : vector<1x1024xf32> to vector<8x1024xf32>
    %91 = arith.mulf %89, %90 : vector<8x1024xf32>
    %cst_15 = arith.constant 0.000000e+00 : f32
    %92 = vector.broadcast %cst_15 : f32 to vector<8x1024xf32>
    %93 = arith.maximumf %92, %91 : vector<8x1024xf32>
    %94 = vector.broadcast %1 : vector<1x1024xf32> to vector<8x1024xf32>
    %95 = arith.mulf %94, %93 : vector<8x1024xf32>
    %cst_16 = arith.constant 2.000000e+00 : f32
    %96 = vector.broadcast %cst_16 : f32 to vector<1x1024xf32>
    %97 = arith.mulf %96, %1 : vector<1x1024xf32>
    %98 = vector.broadcast %97 : vector<1x1024xf32> to vector<8x1024xf32>
    %99 = arith.subf %87, %98 : vector<8x1024xf32>
    %100 = vector.broadcast %7 : vector<1x1024xf32> to vector<8x1024xf32>
    %101 = arith.mulf %99, %100 : vector<8x1024xf32>
    %cst_17 = arith.constant 1.000000e+00 : f32
    %102 = vector.broadcast %cst_17 : f32 to vector<8x1024xf32>
    %103 = arith.minimumf %102, %101 : vector<8x1024xf32>
    %104 = vector.broadcast %3 : vector<1x1024xf32> to vector<8x1024xf32>
    %105 = arith.mulf %104, %103 : vector<8x1024xf32>
    %106 = vector.broadcast %1 : vector<1x1024xf32> to vector<8x1024xf32>
    %107 = arith.addf %106, %105 : vector<8x1024xf32>
    %108 = vector.broadcast %1 : vector<1x1024xf32> to vector<8x1024xf32>
    %109 = arith.cmpf olt, %85, %108 : vector<8x1024xf32>
    %110 = vector.broadcast %1 : vector<1x1024xf32> to vector<8x1024xf32>
    %111 = arith.cmpf ogt, %85, %110 : vector<8x1024xf32>
    %112 = vector.broadcast %1 : vector<1x1024xf32> to vector<8x1024xf32>
    %113 = arith.cmpf olt, %86, %112 : vector<8x1024xf32>
    %114 = vector.broadcast %1 : vector<1x1024xf32> to vector<8x1024xf32>
    %115 = arith.cmpf ogt, %86, %114 : vector<8x1024xf32>
    %cst_18 = arith.constant dense<true> : vector<8x1024xi1>
    %116 = arith.xori %109, %cst_18 : vector<8x1024xi1>
    %cst_19 = arith.constant dense<true> : vector<8x1024xi1>
    %117 = arith.xori %113, %cst_19 : vector<8x1024xi1>
    %118 = arith.andi %116, %117 : vector<8x1024xi1>
    %119 = arith.andi %111, %113 : vector<8x1024xi1>
    %120 = arith.andi %109, %115 : vector<8x1024xi1>
    %121 = arith.ori %119, %120 : vector<8x1024xi1>
    %122 = arith.minimumf %85, %86 : vector<8x1024xf32>
    %123 = arith.select %118, %107, %95 : vector<8x1024xi1>, vector<8x1024xf32>
    %124 = arith.select %121, %122, %123 : vector<8x1024xi1>, vector<8x1024xf32>
    %125 = vector.extract_strided_slice %124 {offsets = [0, 0], sizes = [1, 1024], strides = [1, 1]} : vector<8x1024xf32> to vector<1x1024xf32>
    %c0_20 = arith.constant 0 : index
    %c0_21 = arith.constant 0 : index
    %126 = vector.load %arg1[%c0_20, %c0_21] : memref<1x1024xf32, #tpu.memory_space<vmem>>, vector<1x1024xf32>
    %127 = tpu.concatenate %126, %125 in 0 : vector<1x1024xf32>, vector<1x1024xf32> -> vector<2x1024xf32>
    %c0_22 = arith.constant 0 : index
    %c0_23 = arith.constant 0 : index
    %128 = vector.load %arg4[%c0_22, %c0_23] : memref<2x1xf32, #tpu.memory_space<vmem>>, vector<2x1xf32>
    %cst_24 = arith.constant 1.000000e+00 : f32
    %129 = vector.broadcast %cst_24 : f32 to vector<2x1xf32>
    %130 = arith.subf %129, %128 : vector<2x1xf32>
    %cst_25 = arith.constant 1.000000e+00 : f32
    %131 = vector.broadcast %cst_25 : f32 to vector<2x1xf32>
    %132 = arith.divf %131, %128 : vector<2x1xf32>
    %cst_26 = arith.constant 1.000000e+00 : f32
    %133 = vector.broadcast %cst_26 : f32 to vector<2x1xf32>
    %134 = arith.divf %133, %130 : vector<2x1xf32>
    %135 = vector.extract_strided_slice %127 {offsets = [0, 0], sizes = [2, 128], strides = [1, 1]} : vector<2x1024xf32> to vector<2x128xf32>
    %136 = vector.extract_strided_slice %127 {offsets = [0, 128], sizes = [2, 128], strides = [1, 1]} : vector<2x1024xf32> to vector<2x128xf32>
    %137 = arith.addf %135, %136 : vector<2x128xf32>
    %138 = vector.broadcast %128 : vector<2x1xf32> to vector<2x128xf32>
    %139 = arith.subf %137, %138 : vector<2x128xf32>
    %140 = vector.broadcast %132 : vector<2x1xf32> to vector<2x128xf32>
    %141 = arith.mulf %139, %140 : vector<2x128xf32>
    %cst_27 = arith.constant 0.000000e+00 : f32
    %142 = vector.broadcast %cst_27 : f32 to vector<2x128xf32>
    %143 = arith.maximumf %142, %141 : vector<2x128xf32>
    %144 = vector.broadcast %128 : vector<2x1xf32> to vector<2x128xf32>
    %145 = arith.mulf %144, %143 : vector<2x128xf32>
    %cst_28 = arith.constant 2.000000e+00 : f32
    %146 = vector.broadcast %cst_28 : f32 to vector<2x1xf32>
    %147 = arith.mulf %146, %128 : vector<2x1xf32>
    %148 = vector.broadcast %147 : vector<2x1xf32> to vector<2x128xf32>
    %149 = arith.subf %137, %148 : vector<2x128xf32>
    %150 = vector.broadcast %134 : vector<2x1xf32> to vector<2x128xf32>
    %151 = arith.mulf %149, %150 : vector<2x128xf32>
    %cst_29 = arith.constant 1.000000e+00 : f32
    %152 = vector.broadcast %cst_29 : f32 to vector<2x128xf32>
    %153 = arith.minimumf %152, %151 : vector<2x128xf32>
    %154 = vector.broadcast %130 : vector<2x1xf32> to vector<2x128xf32>
    %155 = arith.mulf %154, %153 : vector<2x128xf32>
    %156 = vector.broadcast %128 : vector<2x1xf32> to vector<2x128xf32>
    %157 = arith.addf %156, %155 : vector<2x128xf32>
    %158 = vector.broadcast %128 : vector<2x1xf32> to vector<2x128xf32>
    %159 = arith.cmpf olt, %135, %158 : vector<2x128xf32>
    %160 = vector.broadcast %128 : vector<2x1xf32> to vector<2x128xf32>
    %161 = arith.cmpf ogt, %135, %160 : vector<2x128xf32>
    %162 = vector.broadcast %128 : vector<2x1xf32> to vector<2x128xf32>
    %163 = arith.cmpf olt, %136, %162 : vector<2x128xf32>
    %164 = vector.broadcast %128 : vector<2x1xf32> to vector<2x128xf32>
    %165 = arith.cmpf ogt, %136, %164 : vector<2x128xf32>
    %cst_30 = arith.constant dense<true> : vector<2x128xi1>
    %166 = arith.xori %159, %cst_30 : vector<2x128xi1>
    %cst_31 = arith.constant dense<true> : vector<2x128xi1>
    %167 = arith.xori %163, %cst_31 : vector<2x128xi1>
    %168 = arith.andi %166, %167 : vector<2x128xi1>
    %169 = arith.andi %161, %163 : vector<2x128xi1>
    %170 = arith.andi %159, %165 : vector<2x128xi1>
    %171 = arith.ori %169, %170 : vector<2x128xi1>
    %172 = arith.minimumf %135, %136 : vector<2x128xf32>
    %173 = arith.select %168, %157, %145 : vector<2x128xi1>, vector<2x128xf32>
    %174 = arith.select %171, %172, %173 : vector<2x128xi1>, vector<2x128xf32>
    %175 = vector.extract_strided_slice %127 {offsets = [0, 256], sizes = [2, 128], strides = [1, 1]} : vector<2x1024xf32> to vector<2x128xf32>
    %176 = vector.extract_strided_slice %127 {offsets = [0, 384], sizes = [2, 128], strides = [1, 1]} : vector<2x1024xf32> to vector<2x128xf32>
    %177 = arith.addf %175, %176 : vector<2x128xf32>
    %178 = vector.broadcast %128 : vector<2x1xf32> to vector<2x128xf32>
    %179 = arith.subf %177, %178 : vector<2x128xf32>
    %180 = vector.broadcast %132 : vector<2x1xf32> to vector<2x128xf32>
    %181 = arith.mulf %179, %180 : vector<2x128xf32>
    %cst_32 = arith.constant 0.000000e+00 : f32
    %182 = vector.broadcast %cst_32 : f32 to vector<2x128xf32>
    %183 = arith.maximumf %182, %181 : vector<2x128xf32>
    %184 = vector.broadcast %128 : vector<2x1xf32> to vector<2x128xf32>
    %185 = arith.mulf %184, %183 : vector<2x128xf32>
    %cst_33 = arith.constant 2.000000e+00 : f32
    %186 = vector.broadcast %cst_33 : f32 to vector<2x1xf32>
    %187 = arith.mulf %186, %128 : vector<2x1xf32>
    %188 = vector.broadcast %187 : vector<2x1xf32> to vector<2x128xf32>
    %189 = arith.subf %177, %188 : vector<2x128xf32>
    %190 = vector.broadcast %134 : vector<2x1xf32> to vector<2x128xf32>
    %191 = arith.mulf %189, %190 : vector<2x128xf32>
    %cst_34 = arith.constant 1.000000e+00 : f32
    %192 = vector.broadcast %cst_34 : f32 to vector<2x128xf32>
    %193 = arith.minimumf %192, %191 : vector<2x128xf32>
    %194 = vector.broadcast %130 : vector<2x1xf32> to vector<2x128xf32>
    %195 = arith.mulf %194, %193 : vector<2x128xf32>
    %196 = vector.broadcast %128 : vector<2x1xf32> to vector<2x128xf32>
    %197 = arith.addf %196, %195 : vector<2x128xf32>
    %198 = vector.broadcast %128 : vector<2x1xf32> to vector<2x128xf32>
    %199 = arith.cmpf olt, %175, %198 : vector<2x128xf32>
    %200 = vector.broadcast %128 : vector<2x1xf32> to vector<2x128xf32>
    %201 = arith.cmpf ogt, %175, %200 : vector<2x128xf32>
    %202 = vector.broadcast %128 : vector<2x1xf32> to vector<2x128xf32>
    %203 = arith.cmpf olt, %176, %202 : vector<2x128xf32>
    %204 = vector.broadcast %128 : vector<2x1xf32> to vector<2x128xf32>
    %205 = arith.cmpf ogt, %176, %204 : vector<2x128xf32>
    %cst_35 = arith.constant dense<true> : vector<2x128xi1>
    %206 = arith.xori %199, %cst_35 : vector<2x128xi1>
    %cst_36 = arith.constant dense<true> : vector<2x128xi1>
    %207 = arith.xori %203, %cst_36 : vector<2x128xi1>
    %208 = arith.andi %206, %207 : vector<2x128xi1>
    %209 = arith.andi %201, %203 : vector<2x128xi1>
    %210 = arith.andi %199, %205 : vector<2x128xi1>
    %211 = arith.ori %209, %210 : vector<2x128xi1>
    %212 = arith.minimumf %175, %176 : vector<2x128xf32>
    %213 = arith.select %208, %197, %185 : vector<2x128xi1>, vector<2x128xf32>
    %214 = arith.select %211, %212, %213 : vector<2x128xi1>, vector<2x128xf32>
    %215 = arith.addf %174, %214 : vector<2x128xf32>
    %216 = vector.broadcast %128 : vector<2x1xf32> to vector<2x128xf32>
    %217 = arith.subf %215, %216 : vector<2x128xf32>
    %218 = vector.broadcast %132 : vector<2x1xf32> to vector<2x128xf32>
    %219 = arith.mulf %217, %218 : vector<2x128xf32>
    %cst_37 = arith.constant 0.000000e+00 : f32
    %220 = vector.broadcast %cst_37 : f32 to vector<2x128xf32>
    %221 = arith.maximumf %220, %219 : vector<2x128xf32>
    %222 = vector.broadcast %128 : vector<2x1xf32> to vector<2x128xf32>
    %223 = arith.mulf %222, %221 : vector<2x128xf32>
    %cst_38 = arith.constant 2.000000e+00 : f32
    %224 = vector.broadcast %cst_38 : f32 to vector<2x1xf32>
    %225 = arith.mulf %224, %128 : vector<2x1xf32>
    %226 = vector.broadcast %225 : vector<2x1xf32> to vector<2x128xf32>
    %227 = arith.subf %215, %226 : vector<2x128xf32>
    %228 = vector.broadcast %134 : vector<2x1xf32> to vector<2x128xf32>
    %229 = arith.mulf %227, %228 : vector<2x128xf32>
    %cst_39 = arith.constant 1.000000e+00 : f32
    %230 = vector.broadcast %cst_39 : f32 to vector<2x128xf32>
    %231 = arith.minimumf %230, %229 : vector<2x128xf32>
    %232 = vector.broadcast %130 : vector<2x1xf32> to vector<2x128xf32>
    %233 = arith.mulf %232, %231 : vector<2x128xf32>
    %234 = vector.broadcast %128 : vector<2x1xf32> to vector<2x128xf32>
    %235 = arith.addf %234, %233 : vector<2x128xf32>
    %236 = vector.broadcast %128 : vector<2x1xf32> to vector<2x128xf32>
    %237 = arith.cmpf olt, %174, %236 : vector<2x128xf32>
    %238 = vector.broadcast %128 : vector<2x1xf32> to vector<2x128xf32>
    %239 = arith.cmpf ogt, %174, %238 : vector<2x128xf32>
    %240 = vector.broadcast %128 : vector<2x1xf32> to vector<2x128xf32>
    %241 = arith.cmpf olt, %214, %240 : vector<2x128xf32>
    %242 = vector.broadcast %128 : vector<2x1xf32> to vector<2x128xf32>
    %243 = arith.cmpf ogt, %214, %242 : vector<2x128xf32>
    %cst_40 = arith.constant dense<true> : vector<2x128xi1>
    %244 = arith.xori %237, %cst_40 : vector<2x128xi1>
    %cst_41 = arith.constant dense<true> : vector<2x128xi1>
    %245 = arith.xori %241, %cst_41 : vector<2x128xi1>
    %246 = arith.andi %244, %245 : vector<2x128xi1>
    %247 = arith.andi %239, %241 : vector<2x128xi1>
    %248 = arith.andi %237, %243 : vector<2x128xi1>
    %249 = arith.ori %247, %248 : vector<2x128xi1>
    %250 = arith.minimumf %174, %214 : vector<2x128xf32>
    %251 = arith.select %246, %235, %223 : vector<2x128xi1>, vector<2x128xf32>
    %252 = arith.select %249, %250, %251 : vector<2x128xi1>, vector<2x128xf32>
    %253 = vector.extract_strided_slice %127 {offsets = [0, 512], sizes = [2, 128], strides = [1, 1]} : vector<2x1024xf32> to vector<2x128xf32>
    %254 = vector.extract_strided_slice %127 {offsets = [0, 640], sizes = [2, 128], strides = [1, 1]} : vector<2x1024xf32> to vector<2x128xf32>
    %255 = arith.addf %253, %254 : vector<2x128xf32>
    %256 = vector.broadcast %128 : vector<2x1xf32> to vector<2x128xf32>
    %257 = arith.subf %255, %256 : vector<2x128xf32>
    %258 = vector.broadcast %132 : vector<2x1xf32> to vector<2x128xf32>
    %259 = arith.mulf %257, %258 : vector<2x128xf32>
    %cst_42 = arith.constant 0.000000e+00 : f32
    %260 = vector.broadcast %cst_42 : f32 to vector<2x128xf32>
    %261 = arith.maximumf %260, %259 : vector<2x128xf32>
    %262 = vector.broadcast %128 : vector<2x1xf32> to vector<2x128xf32>
    %263 = arith.mulf %262, %261 : vector<2x128xf32>
    %cst_43 = arith.constant 2.000000e+00 : f32
    %264 = vector.broadcast %cst_43 : f32 to vector<2x1xf32>
    %265 = arith.mulf %264, %128 : vector<2x1xf32>
    %266 = vector.broadcast %265 : vector<2x1xf32> to vector<2x128xf32>
    %267 = arith.subf %255, %266 : vector<2x128xf32>
    %268 = vector.broadcast %134 : vector<2x1xf32> to vector<2x128xf32>
    %269 = arith.mulf %267, %268 : vector<2x128xf32>
    %cst_44 = arith.constant 1.000000e+00 : f32
    %270 = vector.broadcast %cst_44 : f32 to vector<2x128xf32>
    %271 = arith.minimumf %270, %269 : vector<2x128xf32>
    %272 = vector.broadcast %130 : vector<2x1xf32> to vector<2x128xf32>
    %273 = arith.mulf %272, %271 : vector<2x128xf32>
    %274 = vector.broadcast %128 : vector<2x1xf32> to vector<2x128xf32>
    %275 = arith.addf %274, %273 : vector<2x128xf32>
    %276 = vector.broadcast %128 : vector<2x1xf32> to vector<2x128xf32>
    %277 = arith.cmpf olt, %253, %276 : vector<2x128xf32>
    %278 = vector.broadcast %128 : vector<2x1xf32> to vector<2x128xf32>
    %279 = arith.cmpf ogt, %253, %278 : vector<2x128xf32>
    %280 = vector.broadcast %128 : vector<2x1xf32> to vector<2x128xf32>
    %281 = arith.cmpf olt, %254, %280 : vector<2x128xf32>
    %282 = vector.broadcast %128 : vector<2x1xf32> to vector<2x128xf32>
    %283 = arith.cmpf ogt, %254, %282 : vector<2x128xf32>
    %cst_45 = arith.constant dense<true> : vector<2x128xi1>
    %284 = arith.xori %277, %cst_45 : vector<2x128xi1>
    %cst_46 = arith.constant dense<true> : vector<2x128xi1>
    %285 = arith.xori %281, %cst_46 : vector<2x128xi1>
    %286 = arith.andi %284, %285 : vector<2x128xi1>
    %287 = arith.andi %279, %281 : vector<2x128xi1>
    %288 = arith.andi %277, %283 : vector<2x128xi1>
    %289 = arith.ori %287, %288 : vector<2x128xi1>
    %290 = arith.minimumf %253, %254 : vector<2x128xf32>
    %291 = arith.select %286, %275, %263 : vector<2x128xi1>, vector<2x128xf32>
    %292 = arith.select %289, %290, %291 : vector<2x128xi1>, vector<2x128xf32>
    %293 = vector.extract_strided_slice %127 {offsets = [0, 768], sizes = [2, 128], strides = [1, 1]} : vector<2x1024xf32> to vector<2x128xf32>
    %294 = vector.extract_strided_slice %127 {offsets = [0, 896], sizes = [2, 128], strides = [1, 1]} : vector<2x1024xf32> to vector<2x128xf32>
    %295 = arith.addf %293, %294 : vector<2x128xf32>
    %296 = vector.broadcast %128 : vector<2x1xf32> to vector<2x128xf32>
    %297 = arith.subf %295, %296 : vector<2x128xf32>
    %298 = vector.broadcast %132 : vector<2x1xf32> to vector<2x128xf32>
    %299 = arith.mulf %297, %298 : vector<2x128xf32>
    %cst_47 = arith.constant 0.000000e+00 : f32
    %300 = vector.broadcast %cst_47 : f32 to vector<2x128xf32>
    %301 = arith.maximumf %300, %299 : vector<2x128xf32>
    %302 = vector.broadcast %128 : vector<2x1xf32> to vector<2x128xf32>
    %303 = arith.mulf %302, %301 : vector<2x128xf32>
    %cst_48 = arith.constant 2.000000e+00 : f32
    %304 = vector.broadcast %cst_48 : f32 to vector<2x1xf32>
    %305 = arith.mulf %304, %128 : vector<2x1xf32>
    %306 = vector.broadcast %305 : vector<2x1xf32> to vector<2x128xf32>
    %307 = arith.subf %295, %306 : vector<2x128xf32>
    %308 = vector.broadcast %134 : vector<2x1xf32> to vector<2x128xf32>
    %309 = arith.mulf %307, %308 : vector<2x128xf32>
    %cst_49 = arith.constant 1.000000e+00 : f32
    %310 = vector.broadcast %cst_49 : f32 to vector<2x128xf32>
    %311 = arith.minimumf %310, %309 : vector<2x128xf32>
    %312 = vector.broadcast %130 : vector<2x1xf32> to vector<2x128xf32>
    %313 = arith.mulf %312, %311 : vector<2x128xf32>
    %314 = vector.broadcast %128 : vector<2x1xf32> to vector<2x128xf32>
    %315 = arith.addf %314, %313 : vector<2x128xf32>
    %316 = vector.broadcast %128 : vector<2x1xf32> to vector<2x128xf32>
    %317 = arith.cmpf olt, %293, %316 : vector<2x128xf32>
    %318 = vector.broadcast %128 : vector<2x1xf32> to vector<2x128xf32>
    %319 = arith.cmpf ogt, %293, %318 : vector<2x128xf32>
    %320 = vector.broadcast %128 : vector<2x1xf32> to vector<2x128xf32>
    %321 = arith.cmpf olt, %294, %320 : vector<2x128xf32>
    %322 = vector.broadcast %128 : vector<2x1xf32> to vector<2x128xf32>
    %323 = arith.cmpf ogt, %294, %322 : vector<2x128xf32>
    %cst_50 = arith.constant dense<true> : vector<2x128xi1>
    %324 = arith.xori %317, %cst_50 : vector<2x128xi1>
    %cst_51 = arith.constant dense<true> : vector<2x128xi1>
    %325 = arith.xori %321, %cst_51 : vector<2x128xi1>
    %326 = arith.andi %324, %325 : vector<2x128xi1>
    %327 = arith.andi %319, %321 : vector<2x128xi1>
    %328 = arith.andi %317, %323 : vector<2x128xi1>
    %329 = arith.ori %327, %328 : vector<2x128xi1>
    %330 = arith.minimumf %293, %294 : vector<2x128xf32>
    %331 = arith.select %326, %315, %303 : vector<2x128xi1>, vector<2x128xf32>
    %332 = arith.select %329, %330, %331 : vector<2x128xi1>, vector<2x128xf32>
    %333 = arith.addf %292, %332 : vector<2x128xf32>
    %334 = vector.broadcast %128 : vector<2x1xf32> to vector<2x128xf32>
    %335 = arith.subf %333, %334 : vector<2x128xf32>
    %336 = vector.broadcast %132 : vector<2x1xf32> to vector<2x128xf32>
    %337 = arith.mulf %335, %336 : vector<2x128xf32>
    %cst_52 = arith.constant 0.000000e+00 : f32
    %338 = vector.broadcast %cst_52 : f32 to vector<2x128xf32>
    %339 = arith.maximumf %338, %337 : vector<2x128xf32>
    %340 = vector.broadcast %128 : vector<2x1xf32> to vector<2x128xf32>
    %341 = arith.mulf %340, %339 : vector<2x128xf32>
    %cst_53 = arith.constant 2.000000e+00 : f32
    %342 = vector.broadcast %cst_53 : f32 to vector<2x1xf32>
    %343 = arith.mulf %342, %128 : vector<2x1xf32>
    %344 = vector.broadcast %343 : vector<2x1xf32> to vector<2x128xf32>
    %345 = arith.subf %333, %344 : vector<2x128xf32>
    %346 = vector.broadcast %134 : vector<2x1xf32> to vector<2x128xf32>
    %347 = arith.mulf %345, %346 : vector<2x128xf32>
    %cst_54 = arith.constant 1.000000e+00 : f32
    %348 = vector.broadcast %cst_54 : f32 to vector<2x128xf32>
    %349 = arith.minimumf %348, %347 : vector<2x128xf32>
    %350 = vector.broadcast %130 : vector<2x1xf32> to vector<2x128xf32>
    %351 = arith.mulf %350, %349 : vector<2x128xf32>
    %352 = vector.broadcast %128 : vector<2x1xf32> to vector<2x128xf32>
    %353 = arith.addf %352, %351 : vector<2x128xf32>
    %354 = vector.broadcast %128 : vector<2x1xf32> to vector<2x128xf32>
    %355 = arith.cmpf olt, %292, %354 : vector<2x128xf32>
    %356 = vector.broadcast %128 : vector<2x1xf32> to vector<2x128xf32>
    %357 = arith.cmpf ogt, %292, %356 : vector<2x128xf32>
    %358 = vector.broadcast %128 : vector<2x1xf32> to vector<2x128xf32>
    %359 = arith.cmpf olt, %332, %358 : vector<2x128xf32>
    %360 = vector.broadcast %128 : vector<2x1xf32> to vector<2x128xf32>
    %361 = arith.cmpf ogt, %332, %360 : vector<2x128xf32>
    %cst_55 = arith.constant dense<true> : vector<2x128xi1>
    %362 = arith.xori %355, %cst_55 : vector<2x128xi1>
    %cst_56 = arith.constant dense<true> : vector<2x128xi1>
    %363 = arith.xori %359, %cst_56 : vector<2x128xi1>
    %364 = arith.andi %362, %363 : vector<2x128xi1>
    %365 = arith.andi %357, %359 : vector<2x128xi1>
    %366 = arith.andi %355, %361 : vector<2x128xi1>
    %367 = arith.ori %365, %366 : vector<2x128xi1>
    %368 = arith.minimumf %292, %332 : vector<2x128xf32>
    %369 = arith.select %364, %353, %341 : vector<2x128xi1>, vector<2x128xf32>
    %370 = arith.select %367, %368, %369 : vector<2x128xi1>, vector<2x128xf32>
    %371 = arith.addf %252, %370 : vector<2x128xf32>
    %372 = vector.broadcast %128 : vector<2x1xf32> to vector<2x128xf32>
    %373 = arith.subf %371, %372 : vector<2x128xf32>
    %374 = vector.broadcast %132 : vector<2x1xf32> to vector<2x128xf32>
    %375 = arith.mulf %373, %374 : vector<2x128xf32>
    %cst_57 = arith.constant 0.000000e+00 : f32
    %376 = vector.broadcast %cst_57 : f32 to vector<2x128xf32>
    %377 = arith.maximumf %376, %375 : vector<2x128xf32>
    %378 = vector.broadcast %128 : vector<2x1xf32> to vector<2x128xf32>
    %379 = arith.mulf %378, %377 : vector<2x128xf32>
    %cst_58 = arith.constant 2.000000e+00 : f32
    %380 = vector.broadcast %cst_58 : f32 to vector<2x1xf32>
    %381 = arith.mulf %380, %128 : vector<2x1xf32>
    %382 = vector.broadcast %381 : vector<2x1xf32> to vector<2x128xf32>
    %383 = arith.subf %371, %382 : vector<2x128xf32>
    %384 = vector.broadcast %134 : vector<2x1xf32> to vector<2x128xf32>
    %385 = arith.mulf %383, %384 : vector<2x128xf32>
    %cst_59 = arith.constant 1.000000e+00 : f32
    %386 = vector.broadcast %cst_59 : f32 to vector<2x128xf32>
    %387 = arith.minimumf %386, %385 : vector<2x128xf32>
    %388 = vector.broadcast %130 : vector<2x1xf32> to vector<2x128xf32>
    %389 = arith.mulf %388, %387 : vector<2x128xf32>
    %390 = vector.broadcast %128 : vector<2x1xf32> to vector<2x128xf32>
    %391 = arith.addf %390, %389 : vector<2x128xf32>
    %392 = vector.broadcast %128 : vector<2x1xf32> to vector<2x128xf32>
    %393 = arith.cmpf olt, %252, %392 : vector<2x128xf32>
    %394 = vector.broadcast %128 : vector<2x1xf32> to vector<2x128xf32>
    %395 = arith.cmpf ogt, %252, %394 : vector<2x128xf32>
    %396 = vector.broadcast %128 : vector<2x1xf32> to vector<2x128xf32>
    %397 = arith.cmpf olt, %370, %396 : vector<2x128xf32>
    %398 = vector.broadcast %128 : vector<2x1xf32> to vector<2x128xf32>
    %399 = arith.cmpf ogt, %370, %398 : vector<2x128xf32>
    %cst_60 = arith.constant dense<true> : vector<2x128xi1>
    %400 = arith.xori %393, %cst_60 : vector<2x128xi1>
    %cst_61 = arith.constant dense<true> : vector<2x128xi1>
    %401 = arith.xori %397, %cst_61 : vector<2x128xi1>
    %402 = arith.andi %400, %401 : vector<2x128xi1>
    %403 = arith.andi %395, %397 : vector<2x128xi1>
    %404 = arith.andi %393, %399 : vector<2x128xi1>
    %405 = arith.ori %403, %404 : vector<2x128xi1>
    %406 = arith.minimumf %252, %370 : vector<2x128xf32>
    %407 = arith.select %402, %391, %379 : vector<2x128xi1>, vector<2x128xf32>
    %408 = arith.select %405, %406, %407 : vector<2x128xi1>, vector<2x128xf32>
    %c0_62 = arith.constant 0 : index
    %c0_63 = arith.constant 0 : index
    %409 = vector.load %arg5[%c0_62, %c0_63] : memref<2x128xf32, #tpu.memory_space<vmem>>, vector<2x128xf32>
    tpu.vector_store %arg5[%c0_62, %c0_63], %408 {strides = array<i32>} : memref<2x128xf32, #tpu.memory_space<vmem>>, vector<2x128xf32>,
    return
  }
  func.func @transform_0(%arg0: i32) -> (i32, i32) {
    %c0_i32 = arith.constant 0 : i32
    %c0_i32_0 = arith.constant 0 : i32
    return %c0_i32, %arg0 : i32, i32
  }
  func.func @transform_1(%arg0: i32) -> (i32, i32) {
    %c0_i32 = arith.constant 0 : i32
    %c0_i32_0 = arith.constant 0 : i32
    return %c0_i32, %arg0 : i32, i32
  }
  func.func @transform_2(%arg0: i32) -> (i32, i32) {
    %c0_i32 = arith.constant 0 : i32
    %c0_i32_0 = arith.constant 0 : i32
    %c0_i32_1 = arith.constant 0 : i32
    return %c0_i32, %c0_i32_0 : i32, i32
  }
  func.func @transform_3(%arg0: i32) -> (i32, i32) {
    %c0_i32 = arith.constant 0 : i32
    %c0_i32_0 = arith.constant 0 : i32
    %c0_i32_1 = arith.constant 0 : i32
    return %c0_i32, %c0_i32_0 : i32, i32
  }
  func.func @transform_4(%arg0: i32) -> (i32, i32) {
    %c0_i32 = arith.constant 0 : i32
    %c0_i32_0 = arith.constant 0 : i32
    return %c0_i32, %arg0 : i32, i32
  }
}

</mosaic_0001>

<llo_original>
// kernel: covid_no_covid_forward_batched.1
$region0: #{covid_no_covid_forward_batched.1}
  #allocation0 [shape = 'u32[]', space=smem, size = 0x4, offset = 0x4, fixed_abs, tag = 'smem constant byte address 0x4 - core index']
  #allocation1 [shape = 'u32[144,128]{1,0:T(1,128)}', space=vmem, size = 0x12000, scoped, tag = 'internal scratch']
  %s0 = inlined_call_operand.vmem [shape: f32[1,2048], index: 0, kind: input, shape index: {}]
  %s1 = inlined_call_operand.vmem [shape: f32[8,2048], index: 1, kind: input, shape index: {}]
  %s2 = inlined_call_operand.vmem [shape: f32[1,1024], index: 2, kind: input, shape index: {}]
  %s3 = inlined_call_operand.vmem [shape: f32[2,1], index: 3, kind: input, shape index: {}]
  %s4 = inlined_call_operand.hbm [shape: f32[2,256], index: 4, kind: output, shape index: {}]
  %s5 = sld [smem:[#allocation0]]
  $region49: #{covid_no_covid_forward_batched.1} parent=0
    _
  %s7 = ssub.s32 1, %s5
  %s8 = scalar_select 0, %s7, %s5
  $region1: #{covid_no_covid_forward_batched.1} parent=0
    #allocation2 [shape = 'u8[2048]{0}', space=vmem, size = 0x800, scoped, tag = 'output window, operand 0']
    #allocation3 [shape = 's32[2]{0}', space=sflag, size = 0x8, scoped, tag = 'scoped memory for covid_no_covid_forward_batched.1']
    %9 = vsyncpa [#allocation3], 0
    %s10 = scalar_lea.sflag [#allocation3], 1
    %11 = vsyncpa %s10, 0
    loop: start=0, step=1, limit=4
    $region2: #{covid_no_covid_forward_batched.1} parent=1 // loop_pre_header
      _
    $region3: #{covid_no_covid_forward_batched.1} parent=1 // loop_header
      %s13 = sphi 0, %s17
      %p14 = scmp.ge.s32.totalorder %s13, 4
      %s23 = sphi 0, %s25
      %s26 = sphi 0, %s23
      %s27 = sphi 0, %s26
      %s43 = sphi 0, %s27
      %s49 = sphi 0, %s51
      %s52 = sphi 0, %s49
      %s53 = sphi 0, %s52
      %s69 = sphi 0, %s53
      %s73 = sphi 0, %s73
      %s75 = sphi 0, %s73
      %s76 = sphi 0, %s75
      %s90 = sphi 0, %s76
      %s94 = sphi 0, %s94
      %s96 = sphi 0, %s94
      %s97 = sphi 0, %s96
      %s111 = sphi 0, %s97
      %s117 = sphi 0, %s119
      %s120 = sphi 0, %s117
      %s121 = sphi 0, %s120
      %s137 = sphi 0, %s121
    $region4: #{covid_no_covid_forward_batched.1} parent=1 // loop_header_branch
      %16 = sbr.rel (%p14) target = $region8
    $region5: #{covid_no_covid_forward_batched.1} parent=1 // loop_body
      %s18 = ssub.s32 %s13, 1
      %s19 = ssub.s32 %s13, 2
      %s20 = sadd.s32 %s13, 1
      %s21 = ssub.s32 %s13, %s20
      %p22 = scmp.eq.s32.totalorder %s21, 0
      %s24 = sadd.s32 %s23, 1
      %s25 = scalar_select %p22, %s23, %s24
      %p28 = pneg %p22
      %p29 = scmp.eq.s32.totalorder %s13, 1
      %p30 = por %p28, %p29
      %p31 = scmp.ne.s32.totalorder %s23, %s26
      %p32 = scmp.eq.s32.totalorder %s13, 0
      %p33 = por %p31, %p32
      %p34 = scmp.ne.s32.totalorder %s23, %s26
      %p35 = scmp.eq.s32.totalorder %s18, 1
      %p36 = por %p34, %p35
      %p37 = scmp.ne.s32.totalorder %s26, %s27
      %p38 = scmp.eq.s32.totalorder %s18, 0
      %p39 = por %p37, %p38
      %p40 = scmp.ne.s32.totalorder %s26, %s27
      %p41 = scmp.eq.s32.totalorder %s19, 1
      %p42 = por %p40, %p41
      %p44 = scmp.ne.s32.totalorder %s27, %s43
      %p45 = scmp.eq.s32.totalorder %s19, 0
      %p46 = por %p44, %p45
      %s47 = ssub.s32 %s13, %s20
      %p48 = scmp.eq.s32.totalorder %s47, 0
      %s50 = sadd.s32 %s49, 1
      %s51 = scalar_select %p48, %s49, %s50
      %p54 = pneg %p48
      %p55 = scmp.eq.s32.totalorder %s13, 1
      %p56 = por %p54, %p55
      %p57 = scmp.ne.s32.totalorder %s49, %s52
      %p58 = scmp.eq.s32.totalorder %s13, 0
      %p59 = por %p57, %p58
      %p60 = scmp.ne.s32.totalorder %s49, %s52
      %p61 = scmp.eq.s32.totalorder %s18, 1
      %p62 = por %p60, %p61
      %p63 = scmp.ne.s32.totalorder %s52, %s53
      %p64 = scmp.eq.s32.totalorder %s18, 0
      %p65 = por %p63, %p64
      %p66 = scmp.ne.s32.totalorder %s52, %s53
      %p67 = scmp.eq.s32.totalorder %s19, 1
      %p68 = por %p66, %p67
      %p70 = scmp.ne.s32.totalorder %s53, %s69
      %p71 = scmp.eq.s32.totalorder %s19, 0
      %p72 = por %p70, %p71
      %s74 = sadd.s32 %s73, 1
      %p77 = scmp.eq.s32.totalorder %s13, 1
      %p78 = scmp.ne.s32.totalorder %s73, %s75
      %p79 = scmp.eq.s32.totalorder %s13, 0
      %p80 = por %p78, %p79
      %p81 = scmp.ne.s32.totalorder %s73, %s75
      %p82 = scmp.eq.s32.totalorder %s18, 1
      %p83 = por %p81, %p82
      %p84 = scmp.ne.s32.totalorder %s75, %s76
      %p85 = scmp.eq.s32.totalorder %s18, 0
      %p86 = por %p84, %p85
      %p87 = scmp.ne.s32.totalorder %s75, %s76
      %p88 = scmp.eq.s32.totalorder %s19, 1
      %p89 = por %p87, %p88
      %p91 = scmp.ne.s32.totalorder %s76, %s90
      %p92 = scmp.eq.s32.totalorder %s19, 0
      %p93 = por %p91, %p92
      %s95 = sadd.s32 %s94, 1
      %p98 = scmp.eq.s32.totalorder %s13, 1
      %p99 = scmp.ne.s32.totalorder %s94, %s96
      %p100 = scmp.eq.s32.totalorder %s13, 0
      %p101 = por %p99, %p100
      %p102 = scmp.ne.s32.totalorder %s94, %s96
      %p103 = scmp.eq.s32.totalorder %s18, 1
      %p104 = por %p102, %p103
      %p105 = scmp.ne.s32.totalorder %s96, %s97
      %p106 = scmp.eq.s32.totalorder %s18, 0
      %p107 = por %p105, %p106
      %p108 = scmp.ne.s32.totalorder %s96, %s97
      %p109 = scmp.eq.s32.totalorder %s19, 1
      %p110 = por %p108, %p109
      %p112 = scmp.ne.s32.totalorder %s97, %s111
      %p113 = scmp.eq.s32.totalorder %s19, 0
      %p114 = por %p112, %p113
      %s115 = ssub.s32 %s13, %s20
      %p116 = scmp.eq.s32.totalorder %s115, 0
      %s118 = sadd.s32 %s117, 1
      %s119 = scalar_select %p116, %s117, %s118
      %p122 = pneg %p116
      %p123 = scmp.eq.s32.totalorder %s13, 1
      %p124 = por %p122, %p123
      %p125 = scmp.ne.s32.totalorder %s117, %s120
      %p126 = scmp.eq.s32.totalorder %s13, 0
      %p127 = por %p125, %p126
      %p128 = scmp.ne.s32.totalorder %s117, %s120
      %p129 = scmp.eq.s32.totalorder %s18, 1
      %p130 = por %p128, %p129
      %p131 = scmp.ne.s32.totalorder %s120, %s121
      %p132 = scmp.eq.s32.totalorder %s18, 0
      %p133 = por %p131, %p132
      %p134 = scmp.ne.s32.totalorder %s120, %s121
      %p135 = scmp.eq.s32.totalorder %s19, 1
      %p136 = por %p134, %p135
      %p138 = scmp.ne.s32.totalorder %s121, %s137
      %p139 = scmp.eq.s32.totalorder %s19, 0
      %p140 = por %p138, %p139
      %p141 = scmp.le.s32.totalorder 1, %s13
      %p142 = scmp.lt.s32.totalorder %s13, 3
      %p143 = pnand %p141, %p142
      %p144 = pneg %p143
      // Predicated region
      $region9: #{covid_no_covid_forward_batched.1} parent=5 // pred_check
        _
      $region10: #{covid_no_covid_forward_batched.1} parent=5 // pred_check_branch
        %146 = sbr.rel (%p143) target = $region12
      $region11: #{covid_no_covid_forward_batched.1} parent=5 // pred_region
        %s147 = ssub.s32 %s13, 1
        // Predicated region
        $region13: #{covid_no_covid_forward_batched.1} parent=11 // pred_check
          %p148 = pneg %p86
        $region14: #{covid_no_covid_forward_batched.1} parent=11 // pred_check_branch
          %150 = sbr.rel (%p148) target = $region16
        $region15: #{covid_no_covid_forward_batched.1} parent=11 // pred_region
          _
        $region16: #{covid_no_covid_forward_batched.1} parent=11 // pred_fallthru
          _
        // Predicated region
        $region17: #{covid_no_covid_forward_batched.1} parent=11 // pred_check
          %p151 = pneg %p107
        $region18: #{covid_no_covid_forward_batched.1} parent=11 // pred_check_branch
          %153 = sbr.rel (%p151) target = $region20
        $region19: #{covid_no_covid_forward_batched.1} parent=11 // pred_region
          _
        $region20: #{covid_no_covid_forward_batched.1} parent=11 // pred_fallthru
          _
      $region12: #{covid_no_covid_forward_batched.1} parent=5 // pred_fallthru
        _
      %p154 = scmp.lt.s32.totalorder %s13, 2
      // Predicated region
      $region21: #{covid_no_covid_forward_batched.1} parent=5 // pred_check
        %p155 = pneg %p154
      $region22: #{covid_no_covid_forward_batched.1} parent=5 // pred_check_branch
        %157 = sbr.rel (%p155) target = $region24
      $region23: #{covid_no_covid_forward_batched.1} parent=5 // pred_region
        // Predicated region
        $region25: #{covid_no_covid_forward_batched.1} parent=23 // pred_check
          %p158 = pneg %p33
        $region26: #{covid_no_covid_forward_batched.1} parent=23 // pred_check_branch
          %160 = sbr.rel (%p158) target = $region28
        $region27: #{covid_no_covid_forward_batched.1} parent=23 // pred_region
          %s161 = smul.u32 8, %s13
          %p162 = scmp.lt.s32.totalorder %s161, 15
          %s163 = scalar_select %p162, %s161, 15
          %s164 = scalar_lea.vmem %s0, %s163
          %s165 = smul.u32 8, %s13
        $region28: #{covid_no_covid_forward_batched.1} parent=23 // pred_fallthru
          _
        // Predicated region
        $region29: #{covid_no_covid_forward_batched.1} parent=23 // pred_check
          %p166 = pneg %p59
        $region30: #{covid_no_covid_forward_batched.1} parent=23 // pred_check_branch
          %168 = sbr.rel (%p166) target = $region32
        $region31: #{covid_no_covid_forward_batched.1} parent=23 // pred_region
          %s169 = smul.u32 8, %s13
          %p170 = scmp.lt.s32.totalorder %s169, 15
          %s171 = scalar_select %p170, %s169, 15
          %s172 = smul.addr %s171, 8
          %s173 = scalar_lea.vmem %s1, %s172
          %s174 = smul.u32 8, %s13
        $region32: #{covid_no_covid_forward_batched.1} parent=23 // pred_fallthru
          _
      $region24: #{covid_no_covid_forward_batched.1} parent=5 // pred_fallthru
        _
      %p175 = scmp.le.s32.totalorder 1, %s13
      %p176 = scmp.lt.s32.totalorder %s13, 3
      %p177 = pnand %p175, %p176
      %p178 = pneg %p177
      // Predicated region
      $region33: #{covid_no_covid_forward_batched.1} parent=5 // pred_check
        _
      $region34: #{covid_no_covid_forward_batched.1} parent=5 // pred_check_branch
        %180 = sbr.rel (%p177) target = $region36
      $region35: #{covid_no_covid_forward_batched.1} parent=5 // pred_region
        %s181 = ssub.s32 %s13, 1
        %s182 = smul.u32 8, %s18
        %p183 = scmp.lt.s32.totalorder %s182, 15
        %s184 = scalar_select %p183, %s182, 15
        %s185 = scalar_lea.vmem %s0, %s184
        %p186 = pneg %p39
        %p187 = pneg %p36
        %s188 = smul.u32 8, %s18
        %p189 = scmp.lt.s32.totalorder %s188, 15
        %s190 = scalar_select %p189, %s188, 15
        %s191 = smul.addr %s190, 8
        %s192 = scalar_lea.vmem %s1, %s191
        %p193 = pneg %p65
        %p194 = pneg %p62
        %p195 = pneg %p86
        %p196 = pneg %p83
        %p197 = pneg %p107
        %p198 = pneg %p104
        %p199 = pneg %p133
        %p200 = pneg %p130
        %s201 = sand.u32 %s120, 1
        %s202 = scalar_lea.sflag [#allocation3], %s201
        %s203 = sand.u32 %s120, 1
        %s204 = smul.addr %s203, 2
        %s205 = scalar_lea.vmem [#allocation2], %s204
        %s206 = smul.u32 8, %s18
        %p207 = scmp.lt.s32.totalorder %s206, 15
        %s208 = scalar_select %p207, %s206, 15
        %s209 = scalar_lea.vmem %s0, %s208
        %s210 = smul.u32 8, %s18
        %s211 = smul.u32 8, %s18
        %p212 = scmp.lt.s32.totalorder %s211, 15
        %s213 = scalar_select %p212, %s211, 15
        %s214 = smul.addr %s213, 8
        %s215 = scalar_lea.vmem %s1, %s214
        %s216 = smul.u32 8, %s18
        %v217 = vld [vmem:[%s215] sm:$0xff]
        %v218 = vld [vmem:[%s215 + $0x8] sm:$0xff]
        %v219 = vld [vmem:[%s215 + $0x10] sm:$0xff]
        %v220 = vld [vmem:[%s215 + $0x18] sm:$0xff]
        %v221 = vld [vmem:[%s215 + $0x20] sm:$0xff]
        %v222 = vld [vmem:[%s215 + $0x28] sm:$0xff]
        %v223 = vld [vmem:[%s215 + $0x30] sm:$0xff]
        %v224 = vld [vmem:[%s215 + $0x38] sm:$0xff]
        %v225 = vld [vmem:[%s2] sm:$0xff]
        %v226 = vsub.f32 1.0, %v225
        %v227 = vrcp.pop %v225
        %v228 = vmul.f32 1.0, %v227
        %v229 = vrcp.pop %v226
        %v230 = vmul.f32 1.0, %v229
        %v231 = vrot.slane %v217, 1
        %v232 = vrot.slane %v218, 1
        %v233 = vrot.slane %v219, 1
        %v234 = vrot.slane %v220, 1
        %v235 = vrot.slane %v221, 1
        %v236 = vrot.slane %v222, 1
        %v237 = vrot.slane %v223, 1
        %v238 = vrot.slane %v224, 1
        %v239 = vadd.f32 %v217, %v231
        %v240 = vadd.f32 %v218, %v232
        %v241 = vadd.f32 %v219, %v233
        %v242 = vadd.f32 %v220, %v234
        %v243 = vadd.f32 %v221, %v235
        %v244 = vadd.f32 %v222, %v236
        %v245 = vadd.f32 %v223, %v237
        %v246 = vadd.f32 %v224, %v238
        %v248 = vlaneseq
        %v249 = vshrl.u32 %v248, 7
        %v250 = vsub.s32 0, %v249
        %v251 = vrot.slane %v225, %v250
        %v252 = vlaneseq
        %v253 = vshrl.u32 %v252, 7
        %v254 = vsub.s32 1, %v253
        %v255 = vrot.slane %v225, %v254
        %v256 = vlaneseq
        %v257 = vshrl.u32 %v256, 7
        %v258 = vsub.s32 2, %v257
        %v259 = vrot.slane %v225, %v258
        %v260 = vlaneseq
        %v261 = vshrl.u32 %v260, 7
        %v262 = vsub.s32 3, %v261
        %v263 = vrot.slane %v225, %v262
        %v264 = vlaneseq
        %v265 = vshrl.u32 %v264, 7
        %v266 = vsub.s32 4, %v265
        %v267 = vrot.slane %v225, %v266
        %v268 = vlaneseq
        %v269 = vshrl.u32 %v268, 7
        %v270 = vsub.s32 5, %v269
        %v271 = vrot.slane %v225, %v270
        %v272 = vlaneseq
        %v273 = vshrl.u32 %v272, 7
        %v274 = vsub.s32 6, %v273
        %v275 = vrot.slane %v225, %v274
        %v276 = vlaneseq
        %v277 = vshrl.u32 %v276, 7
        %v278 = vsub.s32 7, %v277
        %v279 = vrot.slane %v225, %v278
        %v288 = vsub.f32 %v239, %v251
        %v289 = vsub.f32 %v240, %v255
        %v290 = vsub.f32 %v241, %v259
        %v291 = vsub.f32 %v242, %v263
        %v292 = vsub.f32 %v243, %v267
        %v293 = vsub.f32 %v244, %v271
        %v294 = vsub.f32 %v245, %v275
        %v295 = vsub.f32 %v246, %v279
        %v297 = vlaneseq
        %v298 = vshrl.u32 %v297, 7
        %v299 = vsub.s32 0, %v298
        %v300 = vrot.slane %v228, %v299
        %v301 = vlaneseq
        %v302 = vshrl.u32 %v301, 7
        %v303 = vsub.s32 1, %v302
        %v304 = vrot.slane %v228, %v303
        %v305 = vlaneseq
        %v306 = vshrl.u32 %v305, 7
        %v307 = vsub.s32 2, %v306
        %v308 = vrot.slane %v228, %v307
        %v309 = vlaneseq
        %v310 = vshrl.u32 %v309, 7
        %v311 = vsub.s32 3, %v310
        %v312 = vrot.slane %v228, %v311
        %v313 = vlaneseq
        %v314 = vshrl.u32 %v313, 7
        %v315 = vsub.s32 4, %v314
        %v316 = vrot.slane %v228, %v315
        %v317 = vlaneseq
        %v318 = vshrl.u32 %v317, 7
        %v319 = vsub.s32 5, %v318
        %v320 = vrot.slane %v228, %v319
        %v321 = vlaneseq
        %v322 = vshrl.u32 %v321, 7
        %v323 = vsub.s32 6, %v322
        %v324 = vrot.slane %v228, %v323
        %v325 = vlaneseq
        %v326 = vshrl.u32 %v325, 7
        %v327 = vsub.s32 7, %v326
        %v328 = vrot.slane %v228, %v327
        %v337 = vmul.f32 %v288, %v300
        %v338 = vmul.f32 %v289, %v304
        %v339 = vmul.f32 %v290, %v308
        %v340 = vmul.f32 %v291, %v312
        %v341 = vmul.f32 %v292, %v316
        %v342 = vmul.f32 %v293, %v320
        %v343 = vmul.f32 %v294, %v324
        %v344 = vmul.f32 %v295, %v328
        %v345 = vmax.f32 %v337, 0.0
        %v346 = vmax.f32 %v338, 0.0
        %v347 = vmax.f32 %v339, 0.0
        %v348 = vmax.f32 %v340, 0.0
        %v349 = vmax.f32 %v341, 0.0
        %v350 = vmax.f32 %v342, 0.0
        %v351 = vmax.f32 %v343, 0.0
        %v352 = vmax.f32 %v344, 0.0
        %v353 = vmul.f32 %v251, %v345
        %v354 = vmul.f32 %v255, %v346
        %v355 = vmul.f32 %v259, %v347
        %v356 = vmul.f32 %v263, %v348
        %v357 = vmul.f32 %v267, %v349
        %v358 = vmul.f32 %v271, %v350
        %v359 = vmul.f32 %v275, %v351
        %v360 = vmul.f32 %v279, %v352
        %v361 = vmul.f32 %v225, 2.0
        %v363 = vlaneseq
        %v364 = vshrl.u32 %v363, 7
        %v365 = vsub.s32 0, %v364
        %v366 = vrot.slane %v361, %v365
        %v367 = vlaneseq
        %v368 = vshrl.u32 %v367, 7
        %v369 = vsub.s32 1, %v368
        %v370 = vrot.slane %v361, %v369
        %v371 = vlaneseq
        %v372 = vshrl.u32 %v371, 7
        %v373 = vsub.s32 2, %v372
        %v374 = vrot.slane %v361, %v373
        %v375 = vlaneseq
        %v376 = vshrl.u32 %v375, 7
        %v377 = vsub.s32 3, %v376
        %v378 = vrot.slane %v361, %v377
        %v379 = vlaneseq
        %v380 = vshrl.u32 %v379, 7
        %v381 = vsub.s32 4, %v380
        %v382 = vrot.slane %v361, %v381
        %v383 = vlaneseq
        %v384 = vshrl.u32 %v383, 7
        %v385 = vsub.s32 5, %v384
        %v386 = vrot.slane %v361, %v385
        %v387 = vlaneseq
        %v388 = vshrl.u32 %v387, 7
        %v389 = vsub.s32 6, %v388
        %v390 = vrot.slane %v361, %v389
        %v391 = vlaneseq
        %v392 = vshrl.u32 %v391, 7
        %v393 = vsub.s32 7, %v392
        %v394 = vrot.slane %v361, %v393
        %v403 = vsub.f32 %v239, %v366
        %v404 = vsub.f32 %v240, %v370
        %v405 = vsub.f32 %v241, %v374
        %v406 = vsub.f32 %v242, %v378
        %v407 = vsub.f32 %v243, %v382
        %v408 = vsub.f32 %v244, %v386
        %v409 = vsub.f32 %v245, %v390
        %v410 = vsub.f32 %v246, %v394
        %v412 = vlaneseq
        %v413 = vshrl.u32 %v412, 7
        %v414 = vsub.s32 0, %v413
        %v415 = vrot.slane %v230, %v414
        %v416 = vlaneseq
        %v417 = vshrl.u32 %v416, 7
        %v418 = vsub.s32 1, %v417
        %v419 = vrot.slane %v230, %v418
        %v420 = vlaneseq
        %v421 = vshrl.u32 %v420, 7
        %v422 = vsub.s32 2, %v421
        %v423 = vrot.slane %v230, %v422
        %v424 = vlaneseq
        %v425 = vshrl.u32 %v424, 7
        %v426 = vsub.s32 3, %v425
        %v427 = vrot.slane %v230, %v426
        %v428 = vlaneseq
        %v429 = vshrl.u32 %v428, 7
        %v430 = vsub.s32 4, %v429
        %v431 = vrot.slane %v230, %v430
        %v432 = vlaneseq
        %v433 = vshrl.u32 %v432, 7
        %v434 = vsub.s32 5, %v433
        %v435 = vrot.slane %v230, %v434
        %v436 = vlaneseq
        %v437 = vshrl.u32 %v436, 7
        %v438 = vsub.s32 6, %v437
        %v439 = vrot.slane %v230, %v438
        %v440 = vlaneseq
        %v441 = vshrl.u32 %v440, 7
        %v442 = vsub.s32 7, %v441
        %v443 = vrot.slane %v230, %v442
        %v452 = vmul.f32 %v403, %v415
        %v453 = vmul.f32 %v404, %v419
        %v454 = vmul.f32 %v405, %v423
        %v455 = vmul.f32 %v406, %v427
        %v456 = vmul.f32 %v407, %v431
        %v457 = vmul.f32 %v408, %v435
        %v458 = vmul.f32 %v409, %v439
        %v459 = vmul.f32 %v410, %v443
        %v460 = vmin.f32 %v452, 1.0
        %v461 = vmin.f32 %v453, 1.0
        %v462 = vmin.f32 %v454, 1.0
        %v463 = vmin.f32 %v455, 1.0
        %v464 = vmin.f32 %v456, 1.0
        %v465 = vmin.f32 %v457, 1.0
        %v466 = vmin.f32 %v458, 1.0
        %v467 = vmin.f32 %v459, 1.0
        %v469 = vlaneseq
        %v470 = vshrl.u32 %v469, 7
        %v471 = vsub.s32 0, %v470
        %v472 = vrot.slane %v226, %v471
        %v473 = vlaneseq
        %v474 = vshrl.u32 %v473, 7
        %v475 = vsub.s32 1, %v474
        %v476 = vrot.slane %v226, %v475
        %v477 = vlaneseq
        %v478 = vshrl.u32 %v477, 7
        %v479 = vsub.s32 2, %v478
        %v480 = vrot.slane %v226, %v479
        %v481 = vlaneseq
        %v482 = vshrl.u32 %v481, 7
        %v483 = vsub.s32 3, %v482
        %v484 = vrot.slane %v226, %v483
        %v485 = vlaneseq
        %v486 = vshrl.u32 %v485, 7
        %v487 = vsub.s32 4, %v486
        %v488 = vrot.slane %v226, %v487
        %v489 = vlaneseq
        %v490 = vshrl.u32 %v489, 7
        %v491 = vsub.s32 5, %v490
        %v492 = vrot.slane %v226, %v491
        %v493 = vlaneseq
        %v494 = vshrl.u32 %v493, 7
        %v495 = vsub.s32 6, %v494
        %v496 = vrot.slane %v226, %v495
        %v497 = vlaneseq
        %v498 = vshrl.u32 %v497, 7
        %v499 = vsub.s32 7, %v498
        %v500 = vrot.slane %v226, %v499
        %v509 = vmul.f32 %v472, %v460
        %v510 = vmul.f32 %v476, %v461
        %v511 = vmul.f32 %v480, %v462
        %v512 = vmul.f32 %v484, %v463
        %v513 = vmul.f32 %v488, %v464
        %v514 = vmul.f32 %v492, %v465
        %v515 = vmul.f32 %v496, %v466
        %v516 = vmul.f32 %v500, %v467
        %v517 = vadd.f32 %v251, %v509
        %v518 = vadd.f32 %v255, %v510
        %v519 = vadd.f32 %v259, %v511
        %v520 = vadd.f32 %v263, %v512
        %v521 = vadd.f32 %v267, %v513
        %v522 = vadd.f32 %v271, %v514
        %v523 = vadd.f32 %v275, %v515
        %v524 = vadd.f32 %v279, %v516
        %vm525 = vcmp.lt.f32.partialorder %v217, %v251
        %vm526 = vcmp.lt.f32.partialorder %v218, %v255
        %vm527 = vcmp.lt.f32.partialorder %v219, %v259
        %vm528 = vcmp.lt.f32.partialorder %v220, %v263
        %vm529 = vcmp.lt.f32.partialorder %v221, %v267
        %vm530 = vcmp.lt.f32.partialorder %v222, %v271
        %vm531 = vcmp.lt.f32.partialorder %v223, %v275
        %vm532 = vcmp.lt.f32.partialorder %v224, %v279
        %vm533 = vcmp.gt.f32.partialorder %v217, %v251
        %vm534 = vcmp.gt.f32.partialorder %v218, %v255
        %vm535 = vcmp.gt.f32.partialorder %v219, %v259
        %vm536 = vcmp.gt.f32.partialorder %v220, %v263
        %vm537 = vcmp.gt.f32.partialorder %v221, %v267
        %vm538 = vcmp.gt.f32.partialorder %v222, %v271
        %vm539 = vcmp.gt.f32.partialorder %v223, %v275
        %vm540 = vcmp.gt.f32.partialorder %v224, %v279
        %vm541 = vcmp.lt.f32.partialorder %v231, %v251
        %vm542 = vcmp.lt.f32.partialorder %v232, %v255
        %vm543 = vcmp.lt.f32.partialorder %v233, %v259
        %vm544 = vcmp.lt.f32.partialorder %v234, %v263
        %vm545 = vcmp.lt.f32.partialorder %v235, %v267
        %vm546 = vcmp.lt.f32.partialorder %v236, %v271
        %vm547 = vcmp.lt.f32.partialorder %v237, %v275
        %vm548 = vcmp.lt.f32.partialorder %v238, %v279
        %vm549 = vcmp.gt.f32.partialorder %v231, %v251
        %vm550 = vcmp.gt.f32.partialorder %v232, %v255
        %vm551 = vcmp.gt.f32.partialorder %v233, %v259
        %vm552 = vcmp.gt.f32.partialorder %v234, %v263
        %vm553 = vcmp.gt.f32.partialorder %v235, %v267
        %vm554 = vcmp.gt.f32.partialorder %v236, %v271
        %vm555 = vcmp.gt.f32.partialorder %v237, %v275
        %vm556 = vcmp.gt.f32.partialorder %v238, %v279
        %vm557 = vmxor %vm525, 1
        %vm558 = vmxor %vm526, 1
        %vm559 = vmxor %vm527, 1
        %vm560 = vmxor %vm528, 1
        %vm561 = vmxor %vm529, 1
        %vm562 = vmxor %vm530, 1
        %vm563 = vmxor %vm531, 1
        %vm564 = vmxor %vm532, 1
        %vm565 = vmxor %vm541, 1
        %vm566 = vmxor %vm542, 1
        %vm567 = vmxor %vm543, 1
        %vm568 = vmxor %vm544, 1
        %vm569 = vmxor %vm545, 1
        %vm570 = vmxor %vm546, 1
        %vm571 = vmxor %vm547, 1
        %vm572 = vmxor %vm548, 1
        %vm573 = vmand %vm557, %vm565
        %vm574 = vmand %vm558, %vm566
        %vm575 = vmand %vm559, %vm567
        %vm576 = vmand %vm560, %vm568
        %vm577 = vmand %vm561, %vm569
        %vm578 = vmand %vm562, %vm570
        %vm579 = vmand %vm563, %vm571
        %vm580 = vmand %vm564, %vm572
        %vm581 = vmand %vm533, %vm541
        %vm582 = vmand %vm534, %vm542
        %vm583 = vmand %vm535, %vm543
        %vm584 = vmand %vm536, %vm544
        %vm585 = vmand %vm537, %vm545
        %vm586 = vmand %vm538, %vm546
        %vm587 = vmand %vm539, %vm547
        %vm588 = vmand %vm540, %vm548
        %vm589 = vmand %vm525, %vm549
        %vm590 = vmand %vm526, %vm550
        %vm591 = vmand %vm527, %vm551
        %vm592 = vmand %vm528, %vm552
        %vm593 = vmand %vm529, %vm553
        %vm594 = vmand %vm530, %vm554
        %vm595 = vmand %vm531, %vm555
        %vm596 = vmand %vm532, %vm556
        %vm597 = vmor %vm581, %vm589
        %vm598 = vmor %vm582, %vm590
        %vm599 = vmor %vm583, %vm591
        %vm600 = vmor %vm584, %vm592
        %vm601 = vmor %vm585, %vm593
        %vm602 = vmor %vm586, %vm594
        %vm603 = vmor %vm587, %vm595
        %vm604 = vmor %vm588, %vm596
        %v605 = vmin.f32 %v217, %v231
        %v606 = vmin.f32 %v218, %v232
        %v607 = vmin.f32 %v219, %v233
        %v608 = vmin.f32 %v220, %v234
        %v609 = vmin.f32 %v221, %v235
        %v610 = vmin.f32 %v222, %v236
        %v611 = vmin.f32 %v223, %v237
        %v612 = vmin.f32 %v224, %v238
        %v613 = vsel %vm573, %v517, %v353
        %v614 = vsel %vm574, %v518, %v354
        %v615 = vsel %vm575, %v519, %v355
        %v616 = vsel %vm576, %v520, %v356
        %v617 = vsel %vm577, %v521, %v357
        %v618 = vsel %vm578, %v522, %v358
        %v619 = vsel %vm579, %v523, %v359
        %v620 = vsel %vm580, %v524, %v360
        %v621 = vsel %vm597, %v605, %v613
        %v622 = vsel %vm598, %v606, %v614
        %v623 = vsel %vm599, %v607, %v615
        %v624 = vsel %vm600, %v608, %v616
        %v625 = vsel %vm601, %v609, %v617
        %v626 = vsel %vm602, %v610, %v618
        %v627 = vsel %vm603, %v611, %v619
        %v628 = vsel %vm604, %v612, %v620
        %v629 = vrot.slane %v621, 2
        %v630 = vrot.slane %v622, 2
        %v631 = vrot.slane %v623, 2
        %v632 = vrot.slane %v624, 2
        %v633 = vrot.slane %v625, 2
        %v634 = vrot.slane %v626, 2
        %v635 = vrot.slane %v627, 2
        %v636 = vrot.slane %v628, 2
        %v637 = vadd.f32 %v621, %v629
        %v638 = vadd.f32 %v622, %v630
        %v639 = vadd.f32 %v623, %v631
        %v640 = vadd.f32 %v624, %v632
        %v641 = vadd.f32 %v625, %v633
        %v642 = vadd.f32 %v626, %v634
        %v643 = vadd.f32 %v627, %v635
        %v644 = vadd.f32 %v628, %v636
        %v645 = vsub.f32 %v637, %v251
        %v646 = vsub.f32 %v638, %v255
        %v647 = vsub.f32 %v639, %v259
        %v648 = vsub.f32 %v640, %v263
        %v649 = vsub.f32 %v641, %v267
        %v650 = vsub.f32 %v642, %v271
        %v651 = vsub.f32 %v643, %v275
        %v652 = vsub.f32 %v644, %v279
        %v653 = vmul.f32 %v645, %v300
        %v654 = vmul.f32 %v646, %v304
        %v655 = vmul.f32 %v647, %v308
        %v656 = vmul.f32 %v648, %v312
        %v657 = vmul.f32 %v649, %v316
        %v658 = vmul.f32 %v650, %v320
        %v659 = vmul.f32 %v651, %v324
        %v660 = vmul.f32 %v652, %v328
        %v661 = vmax.f32 %v653, 0.0
        %v662 = vmax.f32 %v654, 0.0
        %v663 = vmax.f32 %v655, 0.0
        %v664 = vmax.f32 %v656, 0.0
        %v665 = vmax.f32 %v657, 0.0
        %v666 = vmax.f32 %v658, 0.0
        %v667 = vmax.f32 %v659, 0.0
        %v668 = vmax.f32 %v660, 0.0
        %v669 = vmul.f32 %v251, %v661
        %v670 = vmul.f32 %v255, %v662
        %v671 = vmul.f32 %v259, %v663
        %v672 = vmul.f32 %v263, %v664
        %v673 = vmul.f32 %v267, %v665
        %v674 = vmul.f32 %v271, %v666
        %v675 = vmul.f32 %v275, %v667
        %v676 = vmul.f32 %v279, %v668
        %v677 = vsub.f32 %v637, %v366
        %v678 = vsub.f32 %v638, %v370
        %v679 = vsub.f32 %v639, %v374
        %v680 = vsub.f32 %v640, %v378
        %v681 = vsub.f32 %v641, %v382
        %v682 = vsub.f32 %v642, %v386
        %v683 = vsub.f32 %v643, %v390
        %v684 = vsub.f32 %v644, %v394
        %v685 = vmul.f32 %v677, %v415
        %v686 = vmul.f32 %v678, %v419
        %v687 = vmul.f32 %v679, %v423
        %v688 = vmul.f32 %v680, %v427
        %v689 = vmul.f32 %v681, %v431
        %v690 = vmul.f32 %v682, %v435
        %v691 = vmul.f32 %v683, %v439
        %v692 = vmul.f32 %v684, %v443
        %v693 = vmin.f32 %v685, 1.0
        %v694 = vmin.f32 %v686, 1.0
        %v695 = vmin.f32 %v687, 1.0
        %v696 = vmin.f32 %v688, 1.0
        %v697 = vmin.f32 %v689, 1.0
        %v698 = vmin.f32 %v690, 1.0
        %v699 = vmin.f32 %v691, 1.0
        %v700 = vmin.f32 %v692, 1.0
        %v701 = vmul.f32 %v472, %v693
        %v702 = vmul.f32 %v476, %v694
        %v703 = vmul.f32 %v480, %v695
        %v704 = vmul.f32 %v484, %v696
        %v705 = vmul.f32 %v488, %v697
        %v706 = vmul.f32 %v492, %v698
        %v707 = vmul.f32 %v496, %v699
        %v708 = vmul.f32 %v500, %v700
        %v709 = vadd.f32 %v251, %v701
        %v710 = vadd.f32 %v255, %v702
        %v711 = vadd.f32 %v259, %v703
        %v712 = vadd.f32 %v263, %v704
        %v713 = vadd.f32 %v267, %v705
        %v714 = vadd.f32 %v271, %v706
        %v715 = vadd.f32 %v275, %v707
        %v716 = vadd.f32 %v279, %v708
        %vm717 = vcmp.lt.f32.partialorder %v621, %v251
        %vm718 = vcmp.lt.f32.partialorder %v622, %v255
        %vm719 = vcmp.lt.f32.partialorder %v623, %v259
        %vm720 = vcmp.lt.f32.partialorder %v624, %v263
        %vm721 = vcmp.lt.f32.partialorder %v625, %v267
        %vm722 = vcmp.lt.f32.partialorder %v626, %v271
        %vm723 = vcmp.lt.f32.partialorder %v627, %v275
        %vm724 = vcmp.lt.f32.partialorder %v628, %v279
        %vm725 = vcmp.gt.f32.partialorder %v621, %v251
        %vm726 = vcmp.gt.f32.partialorder %v622, %v255
        %vm727 = vcmp.gt.f32.partialorder %v623, %v259
        %vm728 = vcmp.gt.f32.partialorder %v624, %v263
        %vm729 = vcmp.gt.f32.partialorder %v625, %v267
        %vm730 = vcmp.gt.f32.partialorder %v626, %v271
        %vm731 = vcmp.gt.f32.partialorder %v627, %v275
        %vm732 = vcmp.gt.f32.partialorder %v628, %v279
        %vm733 = vcmp.lt.f32.partialorder %v629, %v251
        %vm734 = vcmp.lt.f32.partialorder %v630, %v255
        %vm735 = vcmp.lt.f32.partialorder %v631, %v259
        %vm736 = vcmp.lt.f32.partialorder %v632, %v263
        %vm737 = vcmp.lt.f32.partialorder %v633, %v267
        %vm738 = vcmp.lt.f32.partialorder %v634, %v271
        %vm739 = vcmp.lt.f32.partialorder %v635, %v275
        %vm740 = vcmp.lt.f32.partialorder %v636, %v279
        %vm741 = vcmp.gt.f32.partialorder %v629, %v251
        %vm742 = vcmp.gt.f32.partialorder %v630, %v255
        %vm743 = vcmp.gt.f32.partialorder %v631, %v259
        %vm744 = vcmp.gt.f32.partialorder %v632, %v263
        %vm745 = vcmp.gt.f32.partialorder %v633, %v267
        %vm746 = vcmp.gt.f32.partialorder %v634, %v271
        %vm747 = vcmp.gt.f32.partialorder %v635, %v275
        %vm748 = vcmp.gt.f32.partialorder %v636, %v279
        %vm749 = vmxor %vm717, 1
        %vm750 = vmxor %vm718, 1
        %vm751 = vmxor %vm719, 1
        %vm752 = vmxor %vm720, 1
        %vm753 = vmxor %vm721, 1
        %vm754 = vmxor %vm722, 1
        %vm755 = vmxor %vm723, 1
        %vm756 = vmxor %vm724, 1
        %vm757 = vmxor %vm733, 1
        %vm758 = vmxor %vm734, 1
        %vm759 = vmxor %vm735, 1
        %vm760 = vmxor %vm736, 1
        %vm761 = vmxor %vm737, 1
        %vm762 = vmxor %vm738, 1
        %vm763 = vmxor %vm739, 1
        %vm764 = vmxor %vm740, 1
        %vm765 = vmand %vm749, %vm757
        %vm766 = vmand %vm750, %vm758
        %vm767 = vmand %vm751, %vm759
        %vm768 = vmand %vm752, %vm760
        %vm769 = vmand %vm753, %vm761
        %vm770 = vmand %vm754, %vm762
        %vm771 = vmand %vm755, %vm763
        %vm772 = vmand %vm756, %vm764
        %vm773 = vmand %vm725, %vm733
        %vm774 = vmand %vm726, %vm734
        %vm775 = vmand %vm727, %vm735
        %vm776 = vmand %vm728, %vm736
        %vm777 = vmand %vm729, %vm737
        %vm778 = vmand %vm730, %vm738
        %vm779 = vmand %vm731, %vm739
        %vm780 = vmand %vm732, %vm740
        %vm781 = vmand %vm717, %vm741
        %vm782 = vmand %vm718, %vm742
        %vm783 = vmand %vm719, %vm743
        %vm784 = vmand %vm720, %vm744
        %vm785 = vmand %vm721, %vm745
        %vm786 = vmand %vm722, %vm746
        %vm787 = vmand %vm723, %vm747
        %vm788 = vmand %vm724, %vm748
        %vm789 = vmor %vm773, %vm781
        %vm790 = vmor %vm774, %vm782
        %vm791 = vmor %vm775, %vm783
        %vm792 = vmor %vm776, %vm784
        %vm793 = vmor %vm777, %vm785
        %vm794 = vmor %vm778, %vm786
        %vm795 = vmor %vm779, %vm787
        %vm796 = vmor %vm780, %vm788
        %v797 = vmin.f32 %v621, %v629
        %v798 = vmin.f32 %v622, %v630
        %v799 = vmin.f32 %v623, %v631
        %v800 = vmin.f32 %v624, %v632
        %v801 = vmin.f32 %v625, %v633
        %v802 = vmin.f32 %v626, %v634
        %v803 = vmin.f32 %v627, %v635
        %v804 = vmin.f32 %v628, %v636
        %v805 = vsel %vm765, %v709, %v669
        %v806 = vsel %vm766, %v710, %v670
        %v807 = vsel %vm767, %v711, %v671
        %v808 = vsel %vm768, %v712, %v672
        %v809 = vsel %vm769, %v713, %v673
        %v810 = vsel %vm770, %v714, %v674
        %v811 = vsel %vm771, %v715, %v675
        %v812 = vsel %vm772, %v716, %v676
        %v813 = vsel %vm789, %v797, %v805
        %v814 = vsel %vm790, %v798, %v806
        %v815 = vsel %vm791, %v799, %v807
        %v816 = vsel %vm792, %v800, %v808
        %v817 = vsel %vm793, %v801, %v809
        %v818 = vsel %vm794, %v802, %v810
        %v819 = vsel %vm795, %v803, %v811
        %v820 = vsel %vm796, %v804, %v812
        %v821 = vrot.slane %v813, 4
        %v822 = vrot.slane %v814, 4
        %v823 = vrot.slane %v815, 4
        %v824 = vrot.slane %v816, 4
        %v825 = vrot.slane %v817, 4
        %v826 = vrot.slane %v818, 4
        %v827 = vrot.slane %v819, 4
        %v828 = vrot.slane %v820, 4
        %v829 = vadd.f32 %v813, %v821
        %v830 = vadd.f32 %v814, %v822
        %v831 = vadd.f32 %v815, %v823
        %v832 = vadd.f32 %v816, %v824
        %v833 = vadd.f32 %v817, %v825
        %v834 = vadd.f32 %v818, %v826
        %v835 = vadd.f32 %v819, %v827
        %v836 = vadd.f32 %v820, %v828
        %v837 = vsub.f32 %v829, %v251
        %v838 = vsub.f32 %v830, %v255
        %v839 = vsub.f32 %v831, %v259
        %v840 = vsub.f32 %v832, %v263
        %v841 = vsub.f32 %v833, %v267
        %v842 = vsub.f32 %v834, %v271
        %v843 = vsub.f32 %v835, %v275
        %v844 = vsub.f32 %v836, %v279
        %v845 = vmul.f32 %v837, %v300
        %v846 = vmul.f32 %v838, %v304
        %v847 = vmul.f32 %v839, %v308
        %v848 = vmul.f32 %v840, %v312
        %v849 = vmul.f32 %v841, %v316
        %v850 = vmul.f32 %v842, %v320
        %v851 = vmul.f32 %v843, %v324
        %v852 = vmul.f32 %v844, %v328
        %v853 = vmax.f32 %v845, 0.0
        %v854 = vmax.f32 %v846, 0.0
        %v855 = vmax.f32 %v847, 0.0
        %v856 = vmax.f32 %v848, 0.0
        %v857 = vmax.f32 %v849, 0.0
        %v858 = vmax.f32 %v850, 0.0
        %v859 = vmax.f32 %v851, 0.0
        %v860 = vmax.f32 %v852, 0.0
        %v861 = vmul.f32 %v251, %v853
        %v862 = vmul.f32 %v255, %v854
        %v863 = vmul.f32 %v259, %v855
        %v864 = vmul.f32 %v263, %v856
        %v865 = vmul.f32 %v267, %v857
        %v866 = vmul.f32 %v271, %v858
        %v867 = vmul.f32 %v275, %v859
        %v868 = vmul.f32 %v279, %v860
        %v869 = vsub.f32 %v829, %v366
        %v870 = vsub.f32 %v830, %v370
        %v871 = vsub.f32 %v831, %v374
        %v872 = vsub.f32 %v832, %v378
        %v873 = vsub.f32 %v833, %v382
        %v874 = vsub.f32 %v834, %v386
        %v875 = vsub.f32 %v835, %v390
        %v876 = vsub.f32 %v836, %v394
        %v877 = vmul.f32 %v869, %v415
        %v878 = vmul.f32 %v870, %v419
        %v879 = vmul.f32 %v871, %v423
        %v880 = vmul.f32 %v872, %v427
        %v881 = vmul.f32 %v873, %v431
        %v882 = vmul.f32 %v874, %v435
        %v883 = vmul.f32 %v875, %v439
        %v884 = vmul.f32 %v876, %v443
        %v885 = vmin.f32 %v877, 1.0
        %v886 = vmin.f32 %v878, 1.0
        %v887 = vmin.f32 %v879, 1.0
        %v888 = vmin.f32 %v880, 1.0
        %v889 = vmin.f32 %v881, 1.0
        %v890 = vmin.f32 %v882, 1.0
        %v891 = vmin.f32 %v883, 1.0
        %v892 = vmin.f32 %v884, 1.0
        %v893 = vmul.f32 %v472, %v885
        %v894 = vmul.f32 %v476, %v886
        %v895 = vmul.f32 %v480, %v887
        %v896 = vmul.f32 %v484, %v888
        %v897 = vmul.f32 %v488, %v889
        %v898 = vmul.f32 %v492, %v890
        %v899 = vmul.f32 %v496, %v891
        %v900 = vmul.f32 %v500, %v892
        %v901 = vadd.f32 %v251, %v893
        %v902 = vadd.f32 %v255, %v894
        %v903 = vadd.f32 %v259, %v895
        %v904 = vadd.f32 %v263, %v896
        %v905 = vadd.f32 %v267, %v897
        %v906 = vadd.f32 %v271, %v898
        %v907 = vadd.f32 %v275, %v899
        %v908 = vadd.f32 %v279, %v900
        %vm909 = vcmp.lt.f32.partialorder %v813, %v251
        %vm910 = vcmp.lt.f32.partialorder %v814, %v255
        %vm911 = vcmp.lt.f32.partialorder %v815, %v259
        %vm912 = vcmp.lt.f32.partialorder %v816, %v263
        %vm913 = vcmp.lt.f32.partialorder %v817, %v267
        %vm914 = vcmp.lt.f32.partialorder %v818, %v271
        %vm915 = vcmp.lt.f32.partialorder %v819, %v275
        %vm916 = vcmp.lt.f32.partialorder %v820, %v279
        %vm917 = vcmp.gt.f32.partialorder %v813, %v251
        %vm918 = vcmp.gt.f32.partialorder %v814, %v255
        %vm919 = vcmp.gt.f32.partialorder %v815, %v259
        %vm920 = vcmp.gt.f32.partialorder %v816, %v263
        %vm921 = vcmp.gt.f32.partialorder %v817, %v267
        %vm922 = vcmp.gt.f32.partialorder %v818, %v271
        %vm923 = vcmp.gt.f32.partialorder %v819, %v275
        %vm924 = vcmp.gt.f32.partialorder %v820, %v279
        %vm925 = vcmp.lt.f32.partialorder %v821, %v251
        %vm926 = vcmp.lt.f32.partialorder %v822, %v255
        %vm927 = vcmp.lt.f32.partialorder %v823, %v259
        %vm928 = vcmp.lt.f32.partialorder %v824, %v263
        %vm929 = vcmp.lt.f32.partialorder %v825, %v267
        %vm930 = vcmp.lt.f32.partialorder %v826, %v271
        %vm931 = vcmp.lt.f32.partialorder %v827, %v275
        %vm932 = vcmp.lt.f32.partialorder %v828, %v279
        %vm933 = vcmp.gt.f32.partialorder %v821, %v251
        %vm934 = vcmp.gt.f32.partialorder %v822, %v255
        %vm935 = vcmp.gt.f32.partialorder %v823, %v259
        %vm936 = vcmp.gt.f32.partialorder %v824, %v263
        %vm937 = vcmp.gt.f32.partialorder %v825, %v267
        %vm938 = vcmp.gt.f32.partialorder %v826, %v271
        %vm939 = vcmp.gt.f32.partialorder %v827, %v275
        %vm940 = vcmp.gt.f32.partialorder %v828, %v279
        %vm941 = vmxor %vm909, 1
        %vm942 = vmxor %vm910, 1
        %vm943 = vmxor %vm911, 1
        %vm944 = vmxor %vm912, 1
        %vm945 = vmxor %vm913, 1
        %vm946 = vmxor %vm914, 1
        %vm947 = vmxor %vm915, 1
        %vm948 = vmxor %vm916, 1
        %vm949 = vmxor %vm925, 1
        %vm950 = vmxor %vm926, 1
        %vm951 = vmxor %vm927, 1
        %vm952 = vmxor %vm928, 1
        %vm953 = vmxor %vm929, 1
        %vm954 = vmxor %vm930, 1
        %vm955 = vmxor %vm931, 1
        %vm956 = vmxor %vm932, 1
        %vm957 = vmand %vm941, %vm949
        %vm958 = vmand %vm942, %vm950
        %vm959 = vmand %vm943, %vm951
        %vm960 = vmand %vm944, %vm952
        %vm961 = vmand %vm945, %vm953
        %vm962 = vmand %vm946, %vm954
        %vm963 = vmand %vm947, %vm955
        %vm964 = vmand %vm948, %vm956
        %vm965 = vmand %vm917, %vm925
        %vm966 = vmand %vm918, %vm926
        %vm967 = vmand %vm919, %vm927
        %vm968 = vmand %vm920, %vm928
        %vm969 = vmand %vm921, %vm929
        %vm970 = vmand %vm922, %vm930
        %vm971 = vmand %vm923, %vm931
        %vm972 = vmand %vm924, %vm932
        %vm973 = vmand %vm909, %vm933
        %vm974 = vmand %vm910, %vm934
        %vm975 = vmand %vm911, %vm935
        %vm976 = vmand %vm912, %vm936
        %vm977 = vmand %vm913, %vm937
        %vm978 = vmand %vm914, %vm938
        %vm979 = vmand %vm915, %vm939
        %vm980 = vmand %vm916, %vm940
        %vm981 = vmor %vm965, %vm973
        %vm982 = vmor %vm966, %vm974
        %vm983 = vmor %vm967, %vm975
        %vm984 = vmor %vm968, %vm976
        %vm985 = vmor %vm969, %vm977
        %vm986 = vmor %vm970, %vm978
        %vm987 = vmor %vm971, %vm979
        %vm988 = vmor %vm972, %vm980
        %v989 = vmin.f32 %v813, %v821
        %v990 = vmin.f32 %v814, %v822
        %v991 = vmin.f32 %v815, %v823
        %v992 = vmin.f32 %v816, %v824
        %v993 = vmin.f32 %v817, %v825
        %v994 = vmin.f32 %v818, %v826
        %v995 = vmin.f32 %v819, %v827
        %v996 = vmin.f32 %v820, %v828
        %v997 = vsel %vm957, %v901, %v861
        %v998 = vsel %vm958, %v902, %v862
        %v999 = vsel %vm959, %v903, %v863
        %v1000 = vsel %vm960, %v904, %v864
        %v1001 = vsel %vm961, %v905, %v865
        %v1002 = vsel %vm962, %v906, %v866
        %v1003 = vsel %vm963, %v907, %v867
        %v1004 = vsel %vm964, %v908, %v868
        %v1005 = vsel %vm981, %v989, %v997
        %v1006 = vsel %vm982, %v990, %v998
        %v1007 = vsel %vm983, %v991, %v999
        %v1008 = vsel %vm984, %v992, %v1000
        %v1009 = vsel %vm985, %v993, %v1001
        %v1010 = vsel %vm986, %v994, %v1002
        %v1011 = vsel %vm987, %v995, %v1003
        %v1012 = vsel %vm988, %v996, %v1004
        %v1013 = vld [vmem:[%s209] sm:$0xff]
        %v1015 = vlaneseq
        %v1016 = vshrl.u32 %v1015, 7
        %v1017 = vsub.s32 0, %v1016
        %v1018 = vrot.slane %v1013, %v1017
        %v1019 = vlaneseq
        %v1020 = vshrl.u32 %v1019, 7
        %v1021 = vsub.s32 1, %v1020
        %v1022 = vrot.slane %v1013, %v1021
        %v1023 = vlaneseq
        %v1024 = vshrl.u32 %v1023, 7
        %v1025 = vsub.s32 2, %v1024
        %v1026 = vrot.slane %v1013, %v1025
        %v1027 = vlaneseq
        %v1028 = vshrl.u32 %v1027, 7
        %v1029 = vsub.s32 3, %v1028
        %v1030 = vrot.slane %v1013, %v1029
        %v1031 = vlaneseq
        %v1032 = vshrl.u32 %v1031, 7
        %v1033 = vsub.s32 4, %v1032
        %v1034 = vrot.slane %v1013, %v1033
        %v1035 = vlaneseq
        %v1036 = vshrl.u32 %v1035, 7
        %v1037 = vsub.s32 5, %v1036
        %v1038 = vrot.slane %v1013, %v1037
        %v1039 = vlaneseq
        %v1040 = vshrl.u32 %v1039, 7
        %v1041 = vsub.s32 6, %v1040
        %v1042 = vrot.slane %v1013, %v1041
        %v1043 = vlaneseq
        %v1044 = vshrl.u32 %v1043, 7
        %v1045 = vsub.s32 7, %v1044
        %v1046 = vrot.slane %v1013, %v1045
        %v1063 = vrot.slane %v1005, 7
        %v1064 = vrot.slane %v1006, 7
        %v1065 = vrot.slane %v1007, 7
        %v1066 = vrot.slane %v1008, 7
        %v1067 = vrot.slane %v1009, 7
        %v1068 = vrot.slane %v1010, 7
        %v1069 = vrot.slane %v1011, 7
        %v1070 = vrot.slane %v1012, 7
        %vm1079 = vcmask 1040384
        %v1080 = vsel %vm1079, %v1018, %v1063
        %v1081 = vsel %vm1079, %v1022, %v1064
        %v1082 = vsel %vm1079, %v1026, %v1065
        %v1083 = vsel %vm1079, %v1030, %v1066
        %v1084 = vsel %vm1079, %v1034, %v1067
        %v1085 = vsel %vm1079, %v1038, %v1068
        %v1086 = vsel %vm1079, %v1042, %v1069
        %v1087 = vsel %vm1079, %v1046, %v1070
        %v1088 = vld [vmem:[%s3] sm:$0x3]
        %v1089 = vsub.f32 1.0, %v1088
        %v1090 = vrcp.pop %v1088
        %v1091 = vmul.f32 1.0, %v1090
        %v1092 = vrcp.pop %v1089
        %v1093 = vmul.f32 1.0, %v1092
        %v1094 = vadd.f32 %v1080, %v1081
        %1096 = vset.pattern.permute.xlu0 0
        %1097 = vperm.xlu0 %1096, %v1088
        %v1098 = vpop.permute.xlu0 %1097
        %v1100 = vsub.f32 %v1094, %v1098
        %1102 = vset.pattern.permute.xlu0 0
        %1103 = vperm.xlu0 %1102, %v1091
        %v1104 = vpop.permute.xlu0 %1103
        %v1106 = vmul.f32 %v1100, %v1104
        %v1107 = vmax.f32 %v1106, 0.0
        %v1108 = vmul.f32 %v1098, %v1107
        %v1109 = vmul.f32 %v1088, 2.0
        %1111 = vset.pattern.permute.xlu0 0
        %1112 = vperm.xlu0 %1111, %v1109
        %v1113 = vpop.permute.xlu0 %1112
        %v1115 = vsub.f32 %v1094, %v1113
        %1117 = vset.pattern.permute.xlu0 0
        %1118 = vperm.xlu0 %1117, %v1093
        %v1119 = vpop.permute.xlu0 %1118
        %v1121 = vmul.f32 %v1115, %v1119
        %v1122 = vmin.f32 %v1121, 1.0
        %1124 = vset.pattern.permute.xlu0 0
        %1125 = vperm.xlu0 %1124, %v1089
        %v1126 = vpop.permute.xlu0 %1125
        %v1128 = vmul.f32 %v1126, %v1122
        %v1129 = vadd.f32 %v1098, %v1128
        %vm1130 = vcmp.lt.f32.partialorder %v1080, %v1098
        %vm1131 = vcmp.gt.f32.partialorder %v1080, %v1098
        %vm1132 = vcmp.lt.f32.partialorder %v1081, %v1098
        %vm1133 = vcmp.gt.f32.partialorder %v1081, %v1098
        %vm1134 = vmxor %vm1130, 1
        %vm1135 = vmxor %vm1132, 1
        %vm1136 = vmand %vm1134, %vm1135
        %vm1137 = vmand %vm1131, %vm1132
        %vm1138 = vmand %vm1130, %vm1133
        %vm1139 = vmor %vm1137, %vm1138
        %v1140 = vmin.f32 %v1080, %v1081
        %v1141 = vsel %vm1136, %v1129, %v1108
        %v1142 = vsel %vm1139, %v1140, %v1141
        %v1143 = vadd.f32 %v1082, %v1083
        %v1144 = vsub.f32 %v1143, %v1098
        %v1145 = vmul.f32 %v1144, %v1104
        %v1146 = vmax.f32 %v1145, 0.0
        %v1147 = vmul.f32 %v1098, %v1146
        %v1148 = vsub.f32 %v1143, %v1113
        %v1149 = vmul.f32 %v1148, %v1119
        %v1150 = vmin.f32 %v1149, 1.0
        %v1151 = vmul.f32 %v1126, %v1150
        %v1152 = vadd.f32 %v1098, %v1151
        %vm1153 = vcmp.lt.f32.partialorder %v1082, %v1098
        %vm1154 = vcmp.gt.f32.partialorder %v1082, %v1098
        %vm1155 = vcmp.lt.f32.partialorder %v1083, %v1098
        %vm1156 = vcmp.gt.f32.partialorder %v1083, %v1098
        %vm1157 = vmxor %vm1153, 1
        %vm1158 = vmxor %vm1155, 1
        %vm1159 = vmand %vm1157, %vm1158
        %vm1160 = vmand %vm1154, %vm1155
        %vm1161 = vmand %vm1153, %vm1156
        %vm1162 = vmor %vm1160, %vm1161
        %v1163 = vmin.f32 %v1082, %v1083
        %v1164 = vsel %vm1159, %v1152, %v1147
        %v1165 = vsel %vm1162, %v1163, %v1164
        %v1166 = vadd.f32 %v1142, %v1165
        %v1167 = vsub.f32 %v1166, %v1098
        %v1168 = vmul.f32 %v1167, %v1104
        %v1169 = vmax.f32 %v1168, 0.0
        %v1170 = vmul.f32 %v1098, %v1169
        %v1171 = vsub.f32 %v1166, %v1113
        %v1172 = vmul.f32 %v1171, %v1119
        %v1173 = vmin.f32 %v1172, 1.0
        %v1174 = vmul.f32 %v1126, %v1173
        %v1175 = vadd.f32 %v1098, %v1174
        %vm1176 = vcmp.lt.f32.partialorder %v1142, %v1098
        %vm1177 = vcmp.gt.f32.partialorder %v1142, %v1098
        %vm1178 = vcmp.lt.f32.partialorder %v1165, %v1098
        %vm1179 = vcmp.gt.f32.partialorder %v1165, %v1098
        %vm1180 = vmxor %vm1176, 1
        %vm1181 = vmxor %vm1178, 1
        %vm1182 = vmand %vm1180, %vm1181
        %vm1183 = vmand %vm1177, %vm1178
        %vm1184 = vmand %vm1176, %vm1179
        %vm1185 = vmor %vm1183, %vm1184
        %v1186 = vmin.f32 %v1142, %v1165
        %v1187 = vsel %vm1182, %v1175, %v1170
        %v1188 = vsel %vm1185, %v1186, %v1187
        %v1189 = vadd.f32 %v1084, %v1085
        %v1190 = vsub.f32 %v1189, %v1098
        %v1191 = vmul.f32 %v1190, %v1104
        %v1192 = vmax.f32 %v1191, 0.0
        %v1193 = vmul.f32 %v1098, %v1192
        %v1194 = vsub.f32 %v1189, %v1113
        %v1195 = vmul.f32 %v1194, %v1119
        %v1196 = vmin.f32 %v1195, 1.0
        %v1197 = vmul.f32 %v1126, %v1196
        %v1198 = vadd.f32 %v1098, %v1197
        %vm1199 = vcmp.lt.f32.partialorder %v1084, %v1098
        %vm1200 = vcmp.gt.f32.partialorder %v1084, %v1098
        %vm1201 = vcmp.lt.f32.partialorder %v1085, %v1098
        %vm1202 = vcmp.gt.f32.partialorder %v1085, %v1098
        %vm1203 = vmxor %vm1199, 1
        %vm1204 = vmxor %vm1201, 1
        %vm1205 = vmand %vm1203, %vm1204
        %vm1206 = vmand %vm1200, %vm1201
        %vm1207 = vmand %vm1199, %vm1202
        %vm1208 = vmor %vm1206, %vm1207
        %v1209 = vmin.f32 %v1084, %v1085
        %v1210 = vsel %vm1205, %v1198, %v1193
        %v1211 = vsel %vm1208, %v1209, %v1210
        %v1212 = vadd.f32 %v1086, %v1087
        %v1213 = vsub.f32 %v1212, %v1098
        %v1214 = vmul.f32 %v1213, %v1104
        %v1215 = vmax.f32 %v1214, 0.0
        %v1216 = vmul.f32 %v1098, %v1215
        %v1217 = vsub.f32 %v1212, %v1113
        %v1218 = vmul.f32 %v1217, %v1119
        %v1219 = vmin.f32 %v1218, 1.0
        %v1220 = vmul.f32 %v1126, %v1219
        %v1221 = vadd.f32 %v1098, %v1220
        %vm1222 = vcmp.lt.f32.partialorder %v1086, %v1098
        %vm1223 = vcmp.gt.f32.partialorder %v1086, %v1098
        %vm1224 = vcmp.lt.f32.partialorder %v1087, %v1098
        %vm1225 = vcmp.gt.f32.partialorder %v1087, %v1098
        %vm1226 = vmxor %vm1222, 1
        %vm1227 = vmxor %vm1224, 1
        %vm1228 = vmand %vm1226, %vm1227
        %vm1229 = vmand %vm1223, %vm1224
        %vm1230 = vmand %vm1222, %vm1225
        %vm1231 = vmor %vm1229, %vm1230
        %v1232 = vmin.f32 %v1086, %v1087
        %v1233 = vsel %vm1228, %v1221, %v1216
        %v1234 = vsel %vm1231, %v1232, %v1233
        %v1235 = vadd.f32 %v1211, %v1234
        %v1236 = vsub.f32 %v1235, %v1098
        %v1237 = vmul.f32 %v1236, %v1104
        %v1238 = vmax.f32 %v1237, 0.0
        %v1239 = vmul.f32 %v1098, %v1238
        %v1240 = vsub.f32 %v1235, %v1113
        %v1241 = vmul.f32 %v1240, %v1119
        %v1242 = vmin.f32 %v1241, 1.0
        %v1243 = vmul.f32 %v1126, %v1242
        %v1244 = vadd.f32 %v1098, %v1243
        %vm1245 = vcmp.lt.f32.partialorder %v1211, %v1098
        %vm1246 = vcmp.gt.f32.partialorder %v1211, %v1098
        %vm1247 = vcmp.lt.f32.partialorder %v1234, %v1098
        %vm1248 = vcmp.gt.f32.partialorder %v1234, %v1098
        %vm1249 = vmxor %vm1245, 1
        %vm1250 = vmxor %vm1247, 1
        %vm1251 = vmand %vm1249, %vm1250
        %vm1252 = vmand %vm1246, %vm1247
        %vm1253 = vmand %vm1245, %vm1248
        %vm1254 = vmor %vm1252, %vm1253
        %v1255 = vmin.f32 %v1211, %v1234
        %v1256 = vsel %vm1251, %v1244, %v1239
        %v1257 = vsel %vm1254, %v1255, %v1256
        %v1258 = vadd.f32 %v1188, %v1257
        %v1259 = vsub.f32 %v1258, %v1098
        %v1260 = vmul.f32 %v1259, %v1104
        %v1261 = vmax.f32 %v1260, 0.0
        %v1262 = vmul.f32 %v1098, %v1261
        %v1263 = vsub.f32 %v1258, %v1113
        %v1264 = vmul.f32 %v1263, %v1119
        %v1265 = vmin.f32 %v1264, 1.0
        %v1266 = vmul.f32 %v1126, %v1265
        %v1267 = vadd.f32 %v1098, %v1266
        %vm1268 = vcmp.lt.f32.partialorder %v1188, %v1098
        %vm1269 = vcmp.gt.f32.partialorder %v1188, %v1098
        %vm1270 = vcmp.lt.f32.partialorder %v1257, %v1098
        %vm1271 = vcmp.gt.f32.partialorder %v1257, %v1098
        %vm1272 = vmxor %vm1268, 1
        %vm1273 = vmxor %vm1270, 1
        %vm1274 = vmand %vm1272, %vm1273
        %vm1275 = vmand %vm1269, %vm1270
        %vm1276 = vmand %vm1268, %vm1271
        %vm1277 = vmor %vm1275, %vm1276
        %v1278 = vmin.f32 %v1188, %v1257
        %v1279 = vsel %vm1274, %v1267, %v1262
        %v1280 = vsel %vm1277, %v1278, %v1279
        %1281 = vst [vmem:[%s205] sm:$0x3] %v1280
        %s1282 = sand.u32 %s120, 1
        %s1283 = scalar_lea.sflag [#allocation3], %s1282
        %s1284 = sand.u32 %s120, 1
        %s1285 = smul.addr %s1284, 2
        %s1286 = scalar_lea.vmem [#allocation2], %s1285
        // Predicated region
        $region37: #{covid_no_covid_forward_batched.1} parent=35 // pred_check
          %p1287 = pneg %p130
        $region38: #{covid_no_covid_forward_batched.1} parent=35 // pred_check_branch
          %1289 = sbr.rel (%p1287) target = $region40
        $region39: #{covid_no_covid_forward_batched.1} parent=35 // pred_region
          %s1291 = ssub.s32 32, 32
          %1292 = vsyncadd %s1283, %s1291
          %s1293 = smul.addr %s18, 32
          %s1294 = scalar_lea.hbm %s4, %s1293
          %s1296 = sshll.u32 %s1286, 4
          %s1297 = int_to_ptr.vmem [resolvable:$true] %s1296
          %1299 = dma.vmem_to_hbm [thread:$0]  %s1297, 32, %s1294, %s1283
        $region40: #{covid_no_covid_forward_batched.1} parent=35 // pred_fallthru
          _
      $region36: #{covid_no_covid_forward_batched.1} parent=5 // pred_fallthru
        _
      %p1300 = scmp.le.s32.totalorder 2, %s13
      // Predicated region
      $region41: #{covid_no_covid_forward_batched.1} parent=5 // pred_check
        %p1301 = pneg %p1300
      $region42: #{covid_no_covid_forward_batched.1} parent=5 // pred_check_branch
        %1303 = sbr.rel (%p1301) target = $region44
      $region43: #{covid_no_covid_forward_batched.1} parent=5 // pred_region
        %s1304 = ssub.s32 %s13, 2
        // Predicated region
        $region45: #{covid_no_covid_forward_batched.1} parent=43 // pred_check
          %p1305 = pneg %p136
        $region46: #{covid_no_covid_forward_batched.1} parent=43 // pred_check_branch
          %1307 = sbr.rel (%p1305) target = $region48
        $region47: #{covid_no_covid_forward_batched.1} parent=43 // pred_region
          %s1308 = sand.u32 %s121, 1
          %s1309 = scalar_lea.sflag [#allocation3], %s1308
          %s1310 = sand.u32 %s121, 1
          %s1311 = smul.addr %s1310, 2
          %s1312 = scalar_lea.vmem [#allocation2], %s1311
          %1313 = dma.done %s1309, 32
        $region48: #{covid_no_covid_forward_batched.1} parent=43 // pred_fallthru
          _
      $region44: #{covid_no_covid_forward_batched.1} parent=5 // pred_fallthru
        _
    $region6: #{covid_no_covid_forward_batched.1} parent=1 // loop_footer
      %s17 = sadd.s32 1, %s13
    $region7: #{covid_no_covid_forward_batched.1} parent=1 // loop_footer_branch
      %12 = sbr.rel target = $region3
    $region8: #{covid_no_covid_forward_batched.1} parent=1 // loop_exit
      _
    %1314 = vsyncpa [#allocation3], 1
    %s1315 = scalar_lea.sflag [#allocation3], 1
    %1316 = vsyncpa %s1315, 1

</llo_original>
